<compile_context>
chip_gen: v7x
topology: tpu7x:2x2x1
jax: 0.10.0
libtpu: 0.0.40
codegen_flags: <defaults>
</compile_context>

<pallas_src>
import functools

import jax
import jax.numpy as jnp
import numpy as np
from jax.experimental import pallas as pl
from jax.experimental.pallas import tpu as pltpu

BETA = 0.1
ALPHA = 0.01


def _round_up(n, m):
    return ((n + m - 1) // m) * m


# --------------------------------------------------------------------------- #
# Fused kernel (column-batch: every activation is (features, TB), batch on lanes)
# --------------------------------------------------------------------------- #
def _g_fused_kernel(x_ref, w1_ref, w2_ref, w3_ref, b_ref, bw_ref,
                    bc_ref, sel_ref, o_ref, *, D, H, off2, off3):
    DD = D * D
    N1 = 96 + H

    xt = x_ref[...]                                   # (D, TB)

    # ---------------- packed forward ----------------
    # layer 1: rows [0:32] potential h1_pre, [32:96] MW m1_pre, [96:96+H] gamma
    z1 = jnp.dot(w1_ref[...], xt, preferred_element_type=jnp.float32) + b_ref[0:N1, :]
    t1 = jnp.tanh(z1[0:96, :])                        # tanh only on the 96 nonlinear rows
    gamma = z1[96:96 + H, :]                          # linear gamma term (no bias / tanh)

    # layer 2 (block-diagonal over the 96 tanh'd rows)
    z2 = jnp.dot(w2_ref[...], t1, preferred_element_type=jnp.float32) + b_ref[N1:N1 + 96, :]
    t2 = jnp.tanh(z2)                                 # (96, TB)

    # layer 3: rows [0:H] potential output, [H:H+DD] flat MW output
    z3 = (jnp.dot(w3_ref[...], t2, preferred_element_type=jnp.float32)
          + b_ref[N1 + 96:N1 + 96 + H + DD, :])
    f = z3[0:H, :] + gamma                            # (H, TB)  potential_net(x) + gamma(x)
    a = z3[H:H + DD, :]                               # (DD, TB) flat A, row i*D+j = A[i, j]

    # -------- grad_E = 2*beta*x + J_f^T f  (manual back-prop) --------
    h1 = t1[0:32, :]
    h2 = t2[0:32, :]
    vb = jnp.dot(bw_ref[0:32 + D, 0:H], f,
                 preferred_element_type=jnp.float32)  # (32+D, TB) = [W3^T f ; gw^T f]
    d2 = vb[0:32, :] * (1.0 - h2 * h2)
    v2 = jnp.dot(bw_ref[off2:off2 + 32, 0:32], d2,
                 preferred_element_type=jnp.float32)  # (32, TB)  = W2^T d2
    d1 = v2 * (1.0 - h1 * h1)
    g = ((2.0 * BETA) * xt
         + jnp.dot(bw_ref[off3:off3 + D, 0:32], d1,
                   preferred_element_type=jnp.float32)
         + vb[32:32 + D, :])                          # (D, TB)

    # -------- geometry: out = -(L L^T + U - U^T) g - alpha*g --------
    tcol = bc_ref[0].astype(jnp.float32)              # (DD, D): row i*D+j -> g[i]
    trow = bc_ref[1].astype(jnp.float32)              # (DD, D): row i*D+j -> g[j]
    sl_col = sel_ref[0].astype(jnp.float32)           # (D, DD) masked column sums (tril)
    su_col = sel_ref[1].astype(jnp.float32)           # (D, DD) masked column sums (triu)
    sl_row = sel_ref[2].astype(jnp.float32)           # (D, DD) masked row sums   (tril)
    su_row = sel_ref[3].astype(jnp.float32)           # (D, DD) masked row sums   (triu)

    g_col = jnp.dot(tcol, g, preferred_element_type=jnp.float32)         # (DD, TB)
    g_row = jnp.dot(trow, g, preferred_element_type=jnp.float32)         # (DD, TB)
    ag = a * g_col
    t_lt = jnp.dot(sl_col, ag, preferred_element_type=jnp.float32)       # (D, TB) = L^T g
    utg = jnp.dot(su_col, ag, preferred_element_type=jnp.float32)        # (D, TB) = U^T g
    t_row = jnp.dot(trow, t_lt, preferred_element_type=jnp.float32)      # (DD, TB)
    mg = jnp.dot(sl_row, a * t_row, preferred_element_type=jnp.float32)  # (D, TB) = L L^T g
    ug = jnp.dot(su_row, a * g_row, preferred_element_type=jnp.float32)  # (D, TB) = U g

    o_ref[...] = -(mg + ug - utg) - ALPHA * g


# --------------------------------------------------------------------------- #
# One-time parameter packing (outside the hot path)
# --------------------------------------------------------------------------- #
def pack_params(p):
    w1, b1 = np.asarray(p["w1"]), np.asarray(p["b1"])
    w2, b2 = np.asarray(p["w2"]), np.asarray(p["b2"])
    w3, b3 = np.asarray(p["w3"]), np.asarray(p["b3"])
    gw = np.asarray(p["gw"])
    mw1, mb1 = np.asarray(p["mw1"]), np.asarray(p["mb1"])
    mw2, mb2 = np.asarray(p["mw2"]), np.asarray(p["mb2"])
    mw3, mb3 = np.asarray(p["mw3"]), np.asarray(p["mb3"])

    H, D = w3.shape[0], w1.shape[1]
    DD = D * D
    assert H % 8 == 0, "hidden_dim must be a multiple of 8 (module default is 32)"
    N1 = 96 + H
    N3 = H + DD

    # layer 1: rows [0:32] potential, [32:96] MW, [96:96+H] gamma (no bias)
    w1c = np.concatenate([w1, mw1, gw], axis=0).astype(np.float32)            # (N1, D)
    b1c = np.concatenate([b1, mb1, np.zeros((H,), np.float32)])

    # layer 2: block-diagonal on the 96 tanh'd rows
    w2c = np.zeros((96, 96), np.float32)
    w2c[0:32, 0:32] = w2
    w2c[32:96, 32:96] = mw2
    b2c = np.concatenate([b2, mb2])

    # layer 3: [potential out (from rows 0:32) | flat MW out (from rows 32:96)]
    w3c = np.zeros((N3, 96), np.float32)
    w3c[0:H, 0:32] = w3
    w3c[H:, 32:96] = mw3
    b3c = np.concatenate([b3, mb3])

    # single bias blob (column vector, broadcast over lanes in-kernel)
    bias = np.concatenate([b1c, b2c, b3c]).astype(np.float32)[:, None]        # (N1+96+N3, 1)

    # single backward-weight blob; row offsets padded to multiples of 8
    off2 = _round_up(32 + D, 8)
    off3 = off2 + 32
    rows = off3 + _round_up(D, 8)
    cols = max(H, 32)
    bw = np.zeros((rows, cols), np.float32)
    bw[0:32 + D, 0:H] = np.concatenate([w3.T, gw.T], axis=0)                  # [W3^T ; gw^T]
    bw[off2:off2 + 32, 0:32] = w2.T
    bw[off3:off3 + D, 0:32] = w1.T

    # geometry selection constants (exact 0/1 -> stored bf16, halves VMEM)
    idx = np.arange(DD)
    i_idx, j_idx = idx // D, idx % D
    eye = np.arange(D)
    tril = (j_idx <= i_idx).astype(np.float32)
    triu = (j_idx >= i_idx).astype(np.float32)
    tcol = (i_idx[:, None] == eye[None, :]).astype(np.float32)                # (DD, D)
    trow = (j_idx[:, None] == eye[None, :]).astype(np.float32)                # (DD, D)
    col_pick = (j_idx[None, :] == eye[:, None]).astype(np.float32)            # (D, DD)
    row_pick = (i_idx[None, :] == eye[:, None]).astype(np.float32)            # (D, DD)
    bc = np.stack([tcol, trow])                                               # (2, DD, D)
    sel = np.stack([tril[None, :] * col_pick, triu[None, :] * col_pick,
                    tril[None, :] * row_pick, triu[None, :] * row_pick])      # (4, D, DD)

    return dict(
        D=D, H=H, off2=off2, off3=off3,
        w1c=jnp.asarray(w1c), w2c=jnp.asarray(w2c), w3c=jnp.asarray(w3c),
        bias=jnp.asarray(bias), bw=jnp.asarray(bw),
        bc=jnp.asarray(bc, dtype=jnp.bfloat16),
        sel=jnp.asarray(sel, dtype=jnp.bfloat16),
    )


# --------------------------------------------------------------------------- #
# Wrapper: gridded over the batch, weights VMEM-resident, lane-dense I/O
# --------------------------------------------------------------------------- #
def g_forward(packed, x, *, tb=1024):
    D, H = packed["D"], packed["H"]
    DD = D * D
    N1, N3 = 96 + H, H + DD
    B = x.shape[0]

    # lane tile over the batch (multiple of 128); pad B up to a whole number of tiles
    TB = min(_round_up(tb, 128), _round_up(B, 128))
    B_pad = _round_up(B, TB)
    xt = jnp.pad(x.astype(jnp.float32).T, ((0, 0), (0, B_pad - B)))   # (D, B_pad)
    grid = (B_pad // TB,)

    def resident(arr):                                  # DMA'd once, stays in VMEM
        nd = arr.ndim
        return pl.BlockSpec(arr.shape, lambda i, _nd=nd: (0,) * _nd)

    consts = (packed["w1c"], packed["w2c"], packed["w3c"], packed["bias"],
              packed["bw"], packed["bc"], packed["sel"])

    kernel = functools.partial(_g_fused_kernel, D=D, H=H,
                               off2=packed["off2"], off3=packed["off3"])

    # rough cost model so XLA schedules neighbours around the custom call
    mm = (N1 * D + 96 * 96 + N3 * 96 + (32 + D) * H + 32 * 32 + D * 32
          + 3 * DD * D + 4 * D * DD)
    weight_bytes = sum(int(np.prod(c.shape)) * c.dtype.itemsize for c in consts)
    cost = pl.CostEstimate(
        flops=int(2 * mm * B_pad),
        transcendentals=int(192 * B_pad),
        bytes_accessed=int(8 * D * B_pad + weight_bytes),
    )

    out_t = pl.pallas_call(
        kernel,
        out_shape=jax.ShapeDtypeStruct((D, B_pad), jnp.float32),
        grid=grid,
        in_specs=[pl.BlockSpec((D, TB), lambda i: (0, i))] + [resident(c) for c in consts],
        out_specs=pl.BlockSpec((D, TB), lambda i: (0, i)),
        compiler_params=pltpu.CompilerParams(
            dimension_semantics=("parallel",),          # 2x on v7x, no-op on v5e/v6e
            vmem_limit_bytes=48 * 1024 * 1024,
        ),
        cost_estimate=cost,
    )(xt, *consts)

    return out_t[:, :B].T


# --------------------------------------------------------------------------- #
# Deterministic parameter init (xavier_uniform weights, PyTorch-style biases)
# --------------------------------------------------------------------------- #
def init_params(key, input_dim, hidden_dim=32):
    D, H = input_dim, hidden_dim

    def xavier(k, out_f, in_f):
        bound = (6.0 / (in_f + out_f)) ** 0.5
        return jax.random.uniform(k, (out_f, in_f), jnp.float32, -bound, bound)

    def bias(k, out_f, in_f):
        bound = 1.0 / (in_f ** 0.5)
        return jax.random.uniform(k, (out_f,), jnp.float32, -bound, bound)

    ks = jax.random.split(key, 13)
    return dict(
        w1=xavier(ks[0], 32, D),        b1=bias(ks[1], 32, D),
        w2=xavier(ks[2], 32, 32),       b2=bias(ks[3], 32, 32),
        w3=xavier(ks[4], H, 32),        b3=bias(ks[5], H, 32),
        gw=xavier(ks[6], H, D),
        mw1=xavier(ks[7], 64, D),       mb1=bias(ks[8], 64, D),
        mw2=xavier(ks[9], 64, 64),      mb2=bias(ks[10], 64, 64),
        mw3=xavier(ks[11], D * D, 64),  mb3=bias(ks[12], D * D, 64),
    )


# --------------------------------------------------------------------------- #
# Pure-JAX reference (autodiff for grad of potential, like torch jacrev)
# --------------------------------------------------------------------------- #
def _potential_single(p, xs):
    ke = BETA * jnp.sum(xs * xs)
    h1 = jnp.tanh(p["w1"] @ xs + p["b1"])
    h2 = jnp.tanh(p["w2"] @ h1 + p["b2"])
    pe = p["w3"] @ h2 + p["b3"] + p["gw"] @ xs
    return ke + 0.5 * jnp.sum(pe * pe)


def reference_forward(p, x):
    D = x.shape[-1]
    grad_E = jax.vmap(jax.grad(lambda xs: _potential_single(p, xs)))(x)
    m1 = jnp.tanh(x @ p["mw1"].T + p["mb1"])
    m2 = jnp.tanh(m1 @ p["mw2"].T + p["mb2"])
    A = (m2 @ p["mw3"].T + p["mb3"]).reshape(-1, D, D)
    L = jnp.tril(A)
    U = jnp.triu(A)
    M = jnp.einsum('ijk,ilk->ijl', L, L)
    W = U - jnp.swapaxes(U, 1, 2)
    return -jnp.einsum('ijk,ik->ij', M + W, grad_E) - ALPHA * grad_E


if __name__ == "__main__":
    key = jax.random.PRNGKey(0)
    k_param, k_x = jax.random.split(key)

    input_dim = 4      # D
    hidden_dim = 32    # H (module default)
    batch = 8          # B

    params = init_params(k_param, input_dim, hidden_dim)
    packed = pack_params(params)   # one-time packing, outside the hot path
    x = jax.random.normal(k_x, (batch, input_dim), dtype=jnp.float32)

    out = g_forward(packed, x)
    out = jax.block_until_ready(out)

    ref = reference_forward(params, x)
    np.testing.assert_allclose(np.asarray(out), np.asarray(ref),
                               rtol=2e-4, atol=2e-4)
    print("KERNEL_OK")
</pallas_src>

<mosaic_0001>
module attributes {stable_mosaic.version = 11 : i64} {
  func.func @_g_fused_kernel(%arg0: i32, %arg1: memref<4x128xf32, #tpu.memory_space<vmem>>, %arg2: memref<128x4xf32, #tpu.memory_space<vmem>>, %arg3: memref<96x96xf32, #tpu.memory_space<vmem>>, %arg4: memref<48x96xf32, #tpu.memory_space<vmem>>, %arg5: memref<272x1xf32, #tpu.memory_space<vmem>>, %arg6: memref<80x32xf32, #tpu.memory_space<vmem>>, %arg7: memref<2x16x4xbf16, #tpu.memory_space<vmem>>, %arg8: memref<4x4x16xbf16, #tpu.memory_space<vmem>>, %arg9: memref<4x128xf32, #tpu.memory_space<vmem>>) attributes {dimension_semantics = [#tpu.dimension_semantics<parallel>], iteration_bounds = array<i64: 1>, scalar_prefetch = 0 : i64, scratch_operands = 0 : i64, tpu.core_type = #tpu.core_type<tc>, window_params = [{transform_indices = @transform_0, window_bounds = array<i64: 4, 128>}, {pipeline_mode = #tpu.pipeline_mode<synchronous>, transform_indices = @transform_1, window_bounds = array<i64: 128, 4>}, {pipeline_mode = #tpu.pipeline_mode<synchronous>, transform_indices = @transform_2, window_bounds = array<i64: 96, 96>}, {pipeline_mode = #tpu.pipeline_mode<synchronous>, transform_indices = @transform_3, window_bounds = array<i64: 48, 96>}, {pipeline_mode = #tpu.pipeline_mode<synchronous>, transform_indices = @transform_4, window_bounds = array<i64: 272, 1>}, {pipeline_mode = #tpu.pipeline_mode<synchronous>, transform_indices = @transform_5, window_bounds = array<i64: 80, 32>}, {pipeline_mode = #tpu.pipeline_mode<synchronous>, transform_indices = @transform_6, window_bounds = array<i64: 2, 16, 4>}, {pipeline_mode = #tpu.pipeline_mode<synchronous>, transform_indices = @transform_7, window_bounds = array<i64: 4, 4, 16>}, {transform_indices = @transform_8, window_bounds = array<i64: 4, 128>}]} {
    %c0 = arith.constant 0 : index
    %c0_0 = arith.constant 0 : index
    %0 = vector.load %arg1[%c0, %c0_0] : memref<4x128xf32, #tpu.memory_space<vmem>>, vector<4x128xf32>
    %c0_1 = arith.constant 0 : index
    %c0_2 = arith.constant 0 : index
    %1 = vector.load %arg2[%c0_1, %c0_2] : memref<128x4xf32, #tpu.memory_space<vmem>>, vector<128x4xf32>
    %cst = arith.constant dense<0.000000e+00> : vector<128x128xf32>
    %2 = tpu.matmul %1, %0, %cst {dimension_numbers = #tpu.dot_dimension_numbers<[1], [0], [0], [1], [0, 0, 1, 1], [], []>} : vector<128x4xf32>, vector<4x128xf32>, vector<128x128xf32> -> vector<128x128xf32>
    %c0_3 = arith.constant 0 : index
    %c0_4 = arith.constant 0 : index
    %3 = vector.load %arg5[%c0_3, %c0_4] : memref<272x1xf32, #tpu.memory_space<vmem>>, vector<128x1xf32>
    %4 = vector.broadcast %3 : vector<128x1xf32> to vector<128x128xf32>
    %5 = arith.addf %2, %4 : vector<128x128xf32>
    %6 = vector.extract_strided_slice %5 {offsets = [0, 0], sizes = [96, 128], strides = [1, 1]} : vector<128x128xf32> to vector<96x128xf32>
    %7 = math.tanh %6 : vector<96x128xf32>
    %8 = vector.extract_strided_slice %5 {offsets = [96, 0], sizes = [32, 128], strides = [1, 1]} : vector<128x128xf32> to vector<32x128xf32>
    %c0_5 = arith.constant 0 : index
    %c0_6 = arith.constant 0 : index
    %9 = vector.load %arg3[%c0_5, %c0_6] : memref<96x96xf32, #tpu.memory_space<vmem>>, vector<96x96xf32>
    %cst_7 = arith.constant dense<0.000000e+00> : vector<96x128xf32>
    %10 = tpu.matmul %9, %7, %cst_7 {dimension_numbers = #tpu.dot_dimension_numbers<[1], [0], [0], [1], [0, 0, 1, 1], [], []>} : vector<96x96xf32>, vector<96x128xf32>, vector<96x128xf32> -> vector<96x128xf32>
    %c128 = arith.constant 128 : index
    %c0_8 = arith.constant 0 : index
    %11 = vector.load %arg5[%c128, %c0_8] : memref<272x1xf32, #tpu.memory_space<vmem>>, vector<96x1xf32>
    %12 = vector.broadcast %11 : vector<96x1xf32> to vector<96x128xf32>
    %13 = arith.addf %10, %12 : vector<96x128xf32>
    %14 = math.tanh %13 : vector<96x128xf32>
    %c0_9 = arith.constant 0 : index
    %c0_10 = arith.constant 0 : index
    %15 = vector.load %arg4[%c0_9, %c0_10] : memref<48x96xf32, #tpu.memory_space<vmem>>, vector<48x96xf32>
    %cst_11 = arith.constant dense<0.000000e+00> : vector<48x128xf32>
    %16 = tpu.matmul %15, %14, %cst_11 {dimension_numbers = #tpu.dot_dimension_numbers<[1], [0], [0], [1], [0, 0, 1, 1], [], []>} : vector<48x96xf32>, vector<96x128xf32>, vector<48x128xf32> -> vector<48x128xf32>
    %c224 = arith.constant 224 : index
    %c0_12 = arith.constant 0 : index
    %17 = vector.load %arg5[%c224, %c0_12] : memref<272x1xf32, #tpu.memory_space<vmem>>, vector<48x1xf32>
    %18 = vector.broadcast %17 : vector<48x1xf32> to vector<48x128xf32>
    %19 = arith.addf %16, %18 : vector<48x128xf32>
    %20 = vector.extract_strided_slice %19 {offsets = [0, 0], sizes = [32, 128], strides = [1, 1]} : vector<48x128xf32> to vector<32x128xf32>
    %21 = arith.addf %20, %8 : vector<32x128xf32>
    %22 = vector.extract_strided_slice %19 {offsets = [32, 0], sizes = [16, 128], strides = [1, 1]} : vector<48x128xf32> to vector<16x128xf32>
    %23 = vector.extract_strided_slice %7 {offsets = [0, 0], sizes = [32, 128], strides = [1, 1]} : vector<96x128xf32> to vector<32x128xf32>
    %24 = vector.extract_strided_slice %14 {offsets = [0, 0], sizes = [32, 128], strides = [1, 1]} : vector<96x128xf32> to vector<32x128xf32>
    %c0_13 = arith.constant 0 : index
    %c0_14 = arith.constant 0 : index
    %25 = vector.load %arg6[%c0_13, %c0_14] : memref<80x32xf32, #tpu.memory_space<vmem>>, vector<36x32xf32>
    %cst_15 = arith.constant dense<0.000000e+00> : vector<36x128xf32>
    %26 = tpu.matmul %25, %21, %cst_15 {dimension_numbers = #tpu.dot_dimension_numbers<[1], [0], [0], [1], [0, 0, 1, 1], [], []>} : vector<36x32xf32>, vector<32x128xf32>, vector<36x128xf32> -> vector<36x128xf32>
    %27 = vector.extract_strided_slice %26 {offsets = [0, 0], sizes = [32, 128], strides = [1, 1]} : vector<36x128xf32> to vector<32x128xf32>
    %28 = arith.mulf %24, %24 : vector<32x128xf32>
    %cst_16 = arith.constant 1.000000e+00 : f32
    %29 = vector.broadcast %cst_16 : f32 to vector<32x128xf32>
    %30 = arith.subf %29, %28 : vector<32x128xf32>
    %31 = arith.mulf %27, %30 : vector<32x128xf32>
    %c40 = arith.constant 40 : index
    %c0_17 = arith.constant 0 : index
    %32 = vector.load %arg6[%c40, %c0_17] : memref<80x32xf32, #tpu.memory_space<vmem>>, vector<32x32xf32>
    %cst_18 = arith.constant dense<0.000000e+00> : vector<32x128xf32>
    %33 = tpu.matmul %32, %31, %cst_18 {dimension_numbers = #tpu.dot_dimension_numbers<[1], [0], [0], [1], [0, 0, 1, 1], [], []>} : vector<32x32xf32>, vector<32x128xf32>, vector<32x128xf32> -> vector<32x128xf32>
    %34 = arith.mulf %23, %23 : vector<32x128xf32>
    %cst_19 = arith.constant 1.000000e+00 : f32
    %35 = vector.broadcast %cst_19 : f32 to vector<32x128xf32>
    %36 = arith.subf %35, %34 : vector<32x128xf32>
    %37 = arith.mulf %33, %36 : vector<32x128xf32>
    %cst_20 = arith.constant 2.000000e-01 : f32
    %38 = vector.broadcast %cst_20 : f32 to vector<4x128xf32>
    %39 = arith.mulf %38, %0 : vector<4x128xf32>
    %c72 = arith.constant 72 : index
    %c0_21 = arith.constant 0 : index
    %40 = vector.load %arg6[%c72, %c0_21] : memref<80x32xf32, #tpu.memory_space<vmem>>, vector<4x32xf32>
    %cst_22 = arith.constant dense<0.000000e+00> : vector<4x128xf32>
    %41 = tpu.matmul %40, %37, %cst_22 {dimension_numbers = #tpu.dot_dimension_numbers<[1], [0], [0], [1], [0, 0, 1, 1], [], []>} : vector<4x32xf32>, vector<32x128xf32>, vector<4x128xf32> -> vector<4x128xf32>
    %42 = arith.addf %39, %41 : vector<4x128xf32>
    %43 = vector.extract_strided_slice %26 {offsets = [32, 0], sizes = [4, 128], strides = [1, 1]} : vector<36x128xf32> to vector<4x128xf32>
    %44 = arith.addf %42, %43 : vector<4x128xf32>
    %c0_23 = arith.constant 0 : index
    %c0_24 = arith.constant 0 : index
    %c0_25 = arith.constant 0 : index
    %45 = vector.load %arg7[%c0_23, %c0_24, %c0_25] : memref<2x16x4xbf16, #tpu.memory_space<vmem>>, vector<1x16x4xbf16>
    %46 = vector.shape_cast %45 : vector<1x16x4xbf16> to vector<16x4xbf16>
    %47 = arith.extf %46 : vector<16x4xbf16> to vector<16x4xf32>
    %c1 = arith.constant 1 : index
    %c0_26 = arith.constant 0 : index
    %c0_27 = arith.constant 0 : index
    %48 = vector.load %arg7[%c1, %c0_26, %c0_27] : memref<2x16x4xbf16, #tpu.memory_space<vmem>>, vector<1x16x4xbf16>
    %49 = vector.shape_cast %48 : vector<1x16x4xbf16> to vector<16x4xbf16>
    %50 = arith.extf %49 : vector<16x4xbf16> to vector<16x4xf32>
    %c0_28 = arith.constant 0 : index
    %c0_29 = arith.constant 0 : index
    %c0_30 = arith.constant 0 : index
    %51 = vector.load %arg8[%c0_28, %c0_29, %c0_30] : memref<4x4x16xbf16, #tpu.memory_space<vmem>>, vector<1x4x16xbf16>
    %52 = vector.shape_cast %51 : vector<1x4x16xbf16> to vector<4x16xbf16>
    %53 = arith.extf %52 : vector<4x16xbf16> to vector<4x16xf32>
    %c1_31 = arith.constant 1 : index
    %c0_32 = arith.constant 0 : index
    %c0_33 = arith.constant 0 : index
    %54 = vector.load %arg8[%c1_31, %c0_32, %c0_33] : memref<4x4x16xbf16, #tpu.memory_space<vmem>>, vector<1x4x16xbf16>
    %55 = vector.shape_cast %54 : vector<1x4x16xbf16> to vector<4x16xbf16>
    %56 = arith.extf %55 : vector<4x16xbf16> to vector<4x16xf32>
    %c2 = arith.constant 2 : index
    %c0_34 = arith.constant 0 : index
    %c0_35 = arith.constant 0 : index
    %57 = vector.load %arg8[%c2, %c0_34, %c0_35] : memref<4x4x16xbf16, #tpu.memory_space<vmem>>, vector<1x4x16xbf16>
    %58 = vector.shape_cast %57 : vector<1x4x16xbf16> to vector<4x16xbf16>
    %59 = arith.extf %58 : vector<4x16xbf16> to vector<4x16xf32>
    %c3 = arith.constant 3 : index
    %c0_36 = arith.constant 0 : index
    %c0_37 = arith.constant 0 : index
    %60 = vector.load %arg8[%c3, %c0_36, %c0_37] : memref<4x4x16xbf16, #tpu.memory_space<vmem>>, vector<1x4x16xbf16>
    %61 = vector.shape_cast %60 : vector<1x4x16xbf16> to vector<4x16xbf16>
    %62 = arith.extf %61 : vector<4x16xbf16> to vector<4x16xf32>
    %cst_38 = arith.constant dense<0.000000e+00> : vector<16x128xf32>
    %63 = tpu.matmul %47, %44, %cst_38 {dimension_numbers = #tpu.dot_dimension_numbers<[1], [0], [0], [1], [0, 0, 1, 1], [], []>} : vector<16x4xf32>, vector<4x128xf32>, vector<16x128xf32> -> vector<16x128xf32>
    %cst_39 = arith.constant dense<0.000000e+00> : vector<16x128xf32>
    %64 = tpu.matmul %50, %44, %cst_39 {dimension_numbers = #tpu.dot_dimension_numbers<[1], [0], [0], [1], [0, 0, 1, 1], [], []>} : vector<16x4xf32>, vector<4x128xf32>, vector<16x128xf32> -> vector<16x128xf32>
    %65 = arith.mulf %22, %63 : vector<16x128xf32>
    %cst_40 = arith.constant dense<0.000000e+00> : vector<4x128xf32>
    %66 = tpu.matmul %53, %65, %cst_40 {dimension_numbers = #tpu.dot_dimension_numbers<[1], [0], [0], [1], [0, 0, 1, 1], [], []>} : vector<4x16xf32>, vector<16x128xf32>, vector<4x128xf32> -> vector<4x128xf32>
    %cst_41 = arith.constant dense<0.000000e+00> : vector<4x128xf32>
    %67 = tpu.matmul %56, %65, %cst_41 {dimension_numbers = #tpu.dot_dimension_numbers<[1], [0], [0], [1], [0, 0, 1, 1], [], []>} : vector<4x16xf32>, vector<16x128xf32>, vector<4x128xf32> -> vector<4x128xf32>
    %cst_42 = arith.constant dense<0.000000e+00> : vector<16x128xf32>
    %68 = tpu.matmul %50, %66, %cst_42 {dimension_numbers = #tpu.dot_dimension_numbers<[1], [0], [0], [1], [0, 0, 1, 1], [], []>} : vector<16x4xf32>, vector<4x128xf32>, vector<16x128xf32> -> vector<16x128xf32>
    %69 = arith.mulf %22, %68 : vector<16x128xf32>
    %cst_43 = arith.constant dense<0.000000e+00> : vector<4x128xf32>
    %70 = tpu.matmul %59, %69, %cst_43 {dimension_numbers = #tpu.dot_dimension_numbers<[1], [0], [0], [1], [0, 0, 1, 1], [], []>} : vector<4x16xf32>, vector<16x128xf32>, vector<4x128xf32> -> vector<4x128xf32>
    %71 = arith.mulf %22, %64 : vector<16x128xf32>
    %cst_44 = arith.constant dense<0.000000e+00> : vector<4x128xf32>
    %72 = tpu.matmul %62, %71, %cst_44 {dimension_numbers = #tpu.dot_dimension_numbers<[1], [0], [0], [1], [0, 0, 1, 1], [], []>} : vector<4x16xf32>, vector<16x128xf32>, vector<4x128xf32> -> vector<4x128xf32>
    %73 = arith.addf %70, %72 : vector<4x128xf32>
    %74 = arith.subf %73, %67 : vector<4x128xf32>
    %cst_45 = arith.constant 0.000000e+00 : f32
    %75 = vector.broadcast %cst_45 : f32 to vector<4x128xf32>
    %76 = arith.subf %75, %74 : vector<4x128xf32>
    %cst_46 = arith.constant 0.00999999977 : f32
    %77 = vector.broadcast %cst_46 : f32 to vector<4x128xf32>
    %78 = arith.mulf %77, %44 : vector<4x128xf32>
    %79 = arith.subf %76, %78 : vector<4x128xf32>
    %c0_47 = arith.constant 0 : index
    %c0_48 = arith.constant 0 : index
    %80 = vector.load %arg9[%c0_47, %c0_48] : memref<4x128xf32, #tpu.memory_space<vmem>>, vector<4x128xf32>
    tpu.vector_store %arg9[%c0_47, %c0_48], %79 {strides = array<i32>} : memref<4x128xf32, #tpu.memory_space<vmem>>, vector<4x128xf32>,
    return
  }
  func.func @transform_0(%arg0: i32) -> (i32, i32) {
    %c0_i32 = arith.constant 0 : i32
    %c0_i32_0 = arith.constant 0 : i32
    return %c0_i32, %arg0 : i32, i32
  }
  func.func @transform_1(%arg0: i32) -> (i32, i32) {
    %c0_i32 = arith.constant 0 : i32
    %c0_i32_0 = arith.constant 0 : i32
    %c0_i32_1 = arith.constant 0 : i32
    return %c0_i32, %c0_i32_0 : i32, i32
  }
  func.func @transform_2(%arg0: i32) -> (i32, i32) {
    %c0_i32 = arith.constant 0 : i32
    %c0_i32_0 = arith.constant 0 : i32
    %c0_i32_1 = arith.constant 0 : i32
    return %c0_i32, %c0_i32_0 : i32, i32
  }
  func.func @transform_3(%arg0: i32) -> (i32, i32) {
    %c0_i32 = arith.constant 0 : i32
    %c0_i32_0 = arith.constant 0 : i32
    %c0_i32_1 = arith.constant 0 : i32
    return %c0_i32, %c0_i32_0 : i32, i32
  }
  func.func @transform_4(%arg0: i32) -> (i32, i32) {
    %c0_i32 = arith.constant 0 : i32
    %c0_i32_0 = arith.constant 0 : i32
    %c0_i32_1 = arith.constant 0 : i32
    return %c0_i32, %c0_i32_0 : i32, i32
  }
  func.func @transform_5(%arg0: i32) -> (i32, i32) {
    %c0_i32 = arith.constant 0 : i32
    %c0_i32_0 = arith.constant 0 : i32
    %c0_i32_1 = arith.constant 0 : i32
    return %c0_i32, %c0_i32_0 : i32, i32
  }
  func.func @transform_6(%arg0: i32) -> (i32, i32, i32) {
    %c0_i32 = arith.constant 0 : i32
    %c0_i32_0 = arith.constant 0 : i32
    %c0_i32_1 = arith.constant 0 : i32
    %c0_i32_2 = arith.constant 0 : i32
    return %c0_i32, %c0_i32_0, %c0_i32_1 : i32, i32, i32
  }
  func.func @transform_7(%arg0: i32) -> (i32, i32, i32) {
    %c0_i32 = arith.constant 0 : i32
    %c0_i32_0 = arith.constant 0 : i32
    %c0_i32_1 = arith.constant 0 : i32
    %c0_i32_2 = arith.constant 0 : i32
    return %c0_i32, %c0_i32_0, %c0_i32_1 : i32, i32, i32
  }
  func.func @transform_8(%arg0: i32) -> (i32, i32) {
    %c0_i32 = arith.constant 0 : i32
    %c0_i32_0 = arith.constant 0 : i32
    return %c0_i32, %arg0 : i32, i32
  }
}

</mosaic_0001>

<llo_original>
// kernel: tpu_custom_call.1
$region0: #{tpu_custom_call.1}
  #allocation0 [shape = 'u32[]', space=smem, size = 0x4, offset = 0x4, fixed_abs, tag = 'smem constant byte address 0x4 - core index']
  #allocation1 [shape = 'u32[144,128]{1,0:T(1,128)}', space=vmem, size = 0x12000, scoped, tag = 'internal scratch']
  %s0 = inlined_call_operand.vmem [shape: f32[4,128], index: 0, kind: input, shape index: {}]
  %s1 = inlined_call_operand.vmem [shape: f32[128,4], index: 1, kind: input, shape index: {}]
  %s2 = inlined_call_operand.vmem [shape: f32[96,96], index: 2, kind: input, shape index: {}]
  %s3 = inlined_call_operand.vmem [shape: f32[48,96], index: 3, kind: input, shape index: {}]
  %s4 = inlined_call_operand.vmem [shape: f32[272,1], index: 4, kind: input, shape index: {}]
  %s5 = inlined_call_operand.vmem [shape: f32[80,32], index: 5, kind: input, shape index: {}]
  %s6 = inlined_call_operand.vmem [shape: bf16[2,16,4], index: 6, kind: input, shape index: {}]
  %s7 = inlined_call_operand.vmem [shape: bf16[4,4,16], index: 7, kind: input, shape index: {}]
  %s8 = inlined_call_operand.hbm [shape: f32[4,128], index: 8, kind: output, shape index: {}]
  %s9 = sld [smem:[#allocation0]]
  $region42: #{tpu_custom_call.1} parent=0
    _
  %s11 = ssub.s32 1, %s9
  %s12 = scalar_select 0, %s11, %s9
  $region1: #{tpu_custom_call.1} parent=0
    #allocation2 [shape = 'u8[2048]{0}', space=vmem, size = 0x800, scoped, tag = 'output window, operand 0, single buffered']
    #allocation3 [shape = 's32[1]{0}', space=sflag, size = 0x4, scoped, tag = 'scoped memory for tpu_custom_call.1']
    %13 = vsyncpa [#allocation3], 0
    // Predicated region
    $region2: #{tpu_custom_call.1} parent=1 // pred_check
      _
    $region3: #{tpu_custom_call.1} parent=1 // pred_check_branch
      %15 = sbr.rel (0) target = $region5
    $region4: #{tpu_custom_call.1} parent=1 // pred_region
      _
    $region5: #{tpu_custom_call.1} parent=1 // pred_fallthru
      _
    // Predicated region
    $region6: #{tpu_custom_call.1} parent=1 // pred_check
      _
    $region7: #{tpu_custom_call.1} parent=1 // pred_check_branch
      %17 = sbr.rel (0) target = $region9
    $region8: #{tpu_custom_call.1} parent=1 // pred_region
      _
    $region9: #{tpu_custom_call.1} parent=1 // pred_fallthru
      _
    // Predicated region
    $region10: #{tpu_custom_call.1} parent=1 // pred_check
      _
    $region11: #{tpu_custom_call.1} parent=1 // pred_check_branch
      %19 = sbr.rel (0) target = $region13
    $region12: #{tpu_custom_call.1} parent=1 // pred_region
      _
    $region13: #{tpu_custom_call.1} parent=1 // pred_fallthru
      _
    // Predicated region
    $region14: #{tpu_custom_call.1} parent=1 // pred_check
      _
    $region15: #{tpu_custom_call.1} parent=1 // pred_check_branch
      %21 = sbr.rel (0) target = $region17
    $region16: #{tpu_custom_call.1} parent=1 // pred_region
      _
    $region17: #{tpu_custom_call.1} parent=1 // pred_fallthru
      _
    // Predicated region
    $region18: #{tpu_custom_call.1} parent=1 // pred_check
      _
    $region19: #{tpu_custom_call.1} parent=1 // pred_check_branch
      %23 = sbr.rel (0) target = $region21
    $region20: #{tpu_custom_call.1} parent=1 // pred_region
      _
    $region21: #{tpu_custom_call.1} parent=1 // pred_fallthru
      _
    // Predicated region
    $region22: #{tpu_custom_call.1} parent=1 // pred_check
      _
    $region23: #{tpu_custom_call.1} parent=1 // pred_check_branch
      %25 = sbr.rel (0) target = $region25
    $region24: #{tpu_custom_call.1} parent=1 // pred_region
      _
    $region25: #{tpu_custom_call.1} parent=1 // pred_fallthru
      _
    // Predicated region
    $region26: #{tpu_custom_call.1} parent=1 // pred_check
      _
    $region27: #{tpu_custom_call.1} parent=1 // pred_check_branch
      %27 = sbr.rel (0) target = $region29
    $region28: #{tpu_custom_call.1} parent=1 // pred_region
      _
    $region29: #{tpu_custom_call.1} parent=1 // pred_fallthru
      _
    // Predicated region
    $region30: #{tpu_custom_call.1} parent=1 // pred_check
      _
    $region31: #{tpu_custom_call.1} parent=1 // pred_check_branch
      %29 = sbr.rel (0) target = $region33
    $region32: #{tpu_custom_call.1} parent=1 // pred_region
      _
    $region33: #{tpu_custom_call.1} parent=1 // pred_fallthru
      _
    %v30 = vld [vmem:[%s0] sm:$0xf]
    %v31 = vld [vmem:[%s1] sm:$0xff]
    %v32 = vld [vmem:[%s1 + $0x8] sm:$0xff]
    %v33 = vld [vmem:[%s1 + $0x10] sm:$0xff]
    %v34 = vld [vmem:[%s1 + $0x18] sm:$0xff]
    %v35 = vld [vmem:[%s1 + $0x20] sm:$0xff]
    %v36 = vld [vmem:[%s1 + $0x28] sm:$0xff]
    %v37 = vld [vmem:[%s1 + $0x30] sm:$0xff]
    %v38 = vld [vmem:[%s1 + $0x38] sm:$0xff]
    %v39 = vld [vmem:[%s1 + $0x40] sm:$0xff]
    %v40 = vld [vmem:[%s1 + $0x48] sm:$0xff]
    %v41 = vld [vmem:[%s1 + $0x50] sm:$0xff]
    %v42 = vld [vmem:[%s1 + $0x58] sm:$0xff]
    %v43 = vld [vmem:[%s1 + $0x60] sm:$0xff]
    %v44 = vld [vmem:[%s1 + $0x68] sm:$0xff]
    %v45 = vld [vmem:[%s1 + $0x70] sm:$0xff]
    %v46 = vld [vmem:[%s1 + $0x78] sm:$0xff]
    %v47 = vld [vmem:[%s4] sm:$0xff]
    %v48 = vld [vmem:[%s4 + $0x8] sm:$0xff]
    %v49 = vld [vmem:[%s4 + $0x10] sm:$0xff]
    %v50 = vld [vmem:[%s4 + $0x18] sm:$0xff]
    %v51 = vld [vmem:[%s4 + $0x20] sm:$0xff]
    %v52 = vld [vmem:[%s4 + $0x28] sm:$0xff]
    %v53 = vld [vmem:[%s4 + $0x30] sm:$0xff]
    %v54 = vld [vmem:[%s4 + $0x38] sm:$0xff]
    %v55 = vld [vmem:[%s4 + $0x40] sm:$0xff]
    %v56 = vld [vmem:[%s4 + $0x48] sm:$0xff]
    %v57 = vld [vmem:[%s4 + $0x50] sm:$0xff]
    %v58 = vld [vmem:[%s4 + $0x58] sm:$0xff]
    %v59 = vld [vmem:[%s4 + $0x60] sm:$0xff]
    %v60 = vld [vmem:[%s4 + $0x68] sm:$0xff]
    %v61 = vld [vmem:[%s4 + $0x70] sm:$0xff]
    %v62 = vld [vmem:[%s4 + $0x78] sm:$0xff]
    %64 = vset.pattern.permute.xlu0 0
    %65 = vperm.xlu0 %64, %v47
    %v66 = vpop.permute.xlu0 %65
    %69 = vset.pattern.permute.xlu0 0
    %70 = vperm.xlu0 %69, %v48
    %v71 = vpop.permute.xlu0 %70
    %74 = vset.pattern.permute.xlu0 0
    %75 = vperm.xlu0 %74, %v49
    %v76 = vpop.permute.xlu0 %75
    %79 = vset.pattern.permute.xlu0 0
    %80 = vperm.xlu0 %79, %v50
    %v81 = vpop.permute.xlu0 %80
    %84 = vset.pattern.permute.xlu0 0
    %85 = vperm.xlu0 %84, %v51
    %v86 = vpop.permute.xlu0 %85
    %89 = vset.pattern.permute.xlu0 0
    %90 = vperm.xlu0 %89, %v52
    %v91 = vpop.permute.xlu0 %90
    %94 = vset.pattern.permute.xlu0 0
    %95 = vperm.xlu0 %94, %v53
    %v96 = vpop.permute.xlu0 %95
    %99 = vset.pattern.permute.xlu0 0
    %100 = vperm.xlu0 %99, %v54
    %v101 = vpop.permute.xlu0 %100
    %104 = vset.pattern.permute.xlu0 0
    %105 = vperm.xlu0 %104, %v55
    %v106 = vpop.permute.xlu0 %105
    %109 = vset.pattern.permute.xlu0 0
    %110 = vperm.xlu0 %109, %v56
    %v111 = vpop.permute.xlu0 %110
    %114 = vset.pattern.permute.xlu0 0
    %115 = vperm.xlu0 %114, %v57
    %v116 = vpop.permute.xlu0 %115
    %119 = vset.pattern.permute.xlu0 0
    %120 = vperm.xlu0 %119, %v58
    %v121 = vpop.permute.xlu0 %120
    %124 = vset.pattern.permute.xlu0 0
    %125 = vperm.xlu0 %124, %v59
    %v126 = vpop.permute.xlu0 %125
    %129 = vset.pattern.permute.xlu0 0
    %130 = vperm.xlu0 %129, %v60
    %v131 = vpop.permute.xlu0 %130
    %134 = vset.pattern.permute.xlu0 0
    %135 = vperm.xlu0 %134, %v61
    %v136 = vpop.permute.xlu0 %135
    %139 = vset.pattern.permute.xlu0 0
    %140 = vperm.xlu0 %139, %v62
    %v141 = vpop.permute.xlu0 %140
    %vm143 = vcmask 31744
    %v145 = vsel %vm143, %v31, 0
    %v148 = vsel %vm143, %v32, 0
    %v151 = vsel %vm143, %v33, 0
    %v154 = vsel %vm143, %v34, 0
    %v157 = vsel %vm143, %v35, 0
    %v160 = vsel %vm143, %v36, 0
    %v163 = vsel %vm143, %v37, 0
    %v166 = vsel %vm143, %v38, 0
    %v169 = vsel %vm143, %v39, 0
    %v172 = vsel %vm143, %v40, 0
    %v175 = vsel %vm143, %v41, 0
    %v178 = vsel %vm143, %v42, 0
    %v181 = vsel %vm143, %v43, 0
    %v184 = vsel %vm143, %v44, 0
    %v187 = vsel %vm143, %v45, 0
    %v190 = vsel %vm143, %v46, 0
    %vm192 = vcmask 1043456
    %v194 = vsel %vm192, %v30, 0
    %196 = vmatprep.subr.mxu0 0.0
    %197 = vmatpush1.msra.mxu0 %v194
    %198 = vmatprep.subr.mxu0 0.0
    %199 = vmatpush1.msra.mxu0 0.0
    %200 = vmatprep.subr.mxu0 0.0
    %201 = vmatpush1.msra.mxu0 0.0
    %202 = vmatprep.subr.mxu0 0.0
    %203 = vmatpush1.msra.mxu0 0.0
    %204 = vmatprep.subr.mxu0 0.0
    %205 = vmatpush1.msra.mxu0 0.0
    %206 = vmatprep.subr.mxu0 0.0
    %207 = vmatpush1.msra.mxu0 0.0
    %208 = vmatprep.subr.mxu0 0.0
    %209 = vmatpush1.msra.mxu0 0.0
    %210 = vmatprep.subr.mxu0 0.0
    %211 = vmatpush1.msra.mxu0 0.0
    %212 = vmatprep.subr.mxu0 0.0
    %213 = vmatpush1.msra.mxu0 0.0
    %214 = vmatprep.subr.mxu0 0.0
    %215 = vmatpush1.msra.mxu0 0.0
    %216 = vmatprep.subr.mxu0 0.0
    %217 = vmatpush1.msra.mxu0 0.0
    %218 = vmatprep.subr.mxu0 0.0
    %219 = vmatpush1.msra.mxu0 0.0
    %220 = vmatprep.subr.mxu0 0.0
    %221 = vmatpush1.msra.mxu0 0.0
    %222 = vmatprep.subr.mxu0 0.0
    %223 = vmatpush1.msra.mxu0 0.0
    %224 = vmatprep.subr.mxu0 0.0
    %225 = vmatpush1.msra.mxu0 0.0
    %226 = vmatprep.subr.mxu0 0.0
    %227 = vmatpush1.msra.mxu0 0.0
    %228 = vmatprep.subr.mxu0 0.0
    %229 = vmatpush1.msra.mxu0 0.0
    %230 = vmatprep.subr.mxu0 0.0
    %231 = vmatpush1.msra.mxu0 0.0
    %232 = vmatprep.subr.mxu0 0.0
    %233 = vmatpush1.msra.mxu0 0.0
    %234 = vmatprep.subr.mxu0 0.0
    %235 = vmatpush1.msra.mxu0 0.0
    %236 = vmatprep.subr.mxu0 0.0
    %237 = vmatpush1.msra.mxu0 0.0
    %238 = vmatprep.subr.mxu0 0.0
    %239 = vmatpush1.msra.mxu0 0.0
    %240 = vmatprep.subr.mxu0 0.0
    %241 = vmatpush1.msra.mxu0 0.0
    %242 = vmatprep.subr.mxu0 0.0
    %243 = vmatpush1.msra.mxu0 0.0
    %244 = vmatprep.subr.mxu0 0.0
    %245 = vmatpush1.msra.mxu0 0.0
    %246 = vmatprep.subr.mxu0 0.0
    %247 = vmatpush1.msra.mxu0 0.0
    %248 = vmatprep.subr.mxu0 0.0
    %249 = vmatpush1.msra.mxu0 0.0
    %250 = vmatprep.subr.mxu0 0.0
    %251 = vmatpush1.msra.mxu0 0.0
    %252 = vmatprep.subr.mxu0 0.0
    %253 = vmatpush1.msra.mxu0 0.0
    %254 = vmatprep.subr.mxu0 0.0
    %255 = vmatpush1.msra.mxu0 0.0
    %256 = vmatprep.subr.mxu0 0.0
    %257 = vmatpush1.msra.mxu0 0.0
    %258 = vmatprep.subr.mxu0 0.0
    %259 = vmatpush1.msra.mxu0 0.0
    %260 = vmatprep.mubr.f32.mxu0 0.0
    %261 = vmatmul.mubr.f32.gmra.mrb[0].mxu0 %v145
    %v262 = vpop.f32.mrb[0].mxu0
    %v263 = vadd.f32 %v66, %v262
    %v264 = vpop.f32.mrb[0].mxu0
    %265 = vmatprep.mubr.f32.mxu0 0.0
    %266 = vmatmul.mubr.f32.gmra.mrb[0].mxu0 %v148
    %v267 = vpop.f32.mrb[0].mxu0
    %v268 = vadd.f32 %v71, %v267
    %v269 = vpop.f32.mrb[0].mxu0
    %270 = vmatprep.mubr.f32.mxu0 0.0
    %271 = vmatmul.mubr.f32.gmra.mrb[0].mxu0 %v151
    %v272 = vpop.f32.mrb[0].mxu0
    %v273 = vadd.f32 %v76, %v272
    %v274 = vpop.f32.mrb[0].mxu0
    %275 = vmatprep.mubr.f32.mxu0 0.0
    %276 = vmatmul.mubr.f32.gmra.mrb[0].mxu0 %v154
    %v277 = vpop.f32.mrb[0].mxu0
    %v278 = vadd.f32 %v81, %v277
    %v279 = vpop.f32.mrb[0].mxu0
    %280 = vmatprep.mubr.f32.mxu0 0.0
    %281 = vmatmul.mubr.f32.gmra.mrb[0].mxu0 %v157
    %v282 = vpop.f32.mrb[0].mxu0
    %v283 = vadd.f32 %v86, %v282
    %v284 = vpop.f32.mrb[0].mxu0
    %285 = vmatprep.mubr.f32.mxu0 0.0
    %286 = vmatmul.mubr.f32.gmra.mrb[0].mxu0 %v160
    %v287 = vpop.f32.mrb[0].mxu0
    %v288 = vadd.f32 %v91, %v287
    %v289 = vpop.f32.mrb[0].mxu0
    %290 = vmatprep.mubr.f32.mxu0 0.0
    %291 = vmatmul.mubr.f32.gmra.mrb[0].mxu0 %v163
    %v292 = vpop.f32.mrb[0].mxu0
    %v293 = vadd.f32 %v96, %v292
    %v294 = vpop.f32.mrb[0].mxu0
    %295 = vmatprep.mubr.f32.mxu0 0.0
    %296 = vmatmul.mubr.f32.gmra.mrb[0].mxu0 %v166
    %v297 = vpop.f32.mrb[0].mxu0
    %v298 = vadd.f32 %v101, %v297
    %v299 = vpop.f32.mrb[0].mxu0
    %300 = vmatprep.mubr.f32.mxu0 0.0
    %301 = vmatmul.mubr.f32.gmra.mrb[0].mxu0 %v169
    %v302 = vpop.f32.mrb[0].mxu0
    %v303 = vadd.f32 %v106, %v302
    %v304 = vpop.f32.mrb[0].mxu0
    %305 = vmatprep.mubr.f32.mxu0 0.0
    %306 = vmatmul.mubr.f32.gmra.mrb[0].mxu0 %v172
    %v307 = vpop.f32.mrb[0].mxu0
    %v308 = vadd.f32 %v111, %v307
    %v309 = vpop.f32.mrb[0].mxu0
    %310 = vmatprep.mubr.f32.mxu0 0.0
    %311 = vmatmul.mubr.f32.gmra.mrb[0].mxu0 %v175
    %v312 = vpop.f32.mrb[0].mxu0
    %v313 = vadd.f32 %v116, %v312
    %v314 = vpop.f32.mrb[0].mxu0
    %315 = vmatprep.mubr.f32.mxu0 0.0
    %316 = vmatmul.mubr.f32.gmra.mrb[0].mxu0 %v178
    %v317 = vpop.f32.mrb[0].mxu0
    %v318 = vadd.f32 %v121, %v317
    %v319 = vpop.f32.mrb[0].mxu0
    %320 = vmatprep.mubr.f32.mxu0 0.0
    %321 = vmatmul.mubr.f32.gmra.mrb[0].mxu0 %v181
    %v322 = vpop.f32.mrb[0].mxu0
    %v323 = vadd.f32 %v126, %v322
    %v324 = vpop.f32.mrb[0].mxu0
    %325 = vmatprep.mubr.f32.mxu0 0.0
    %326 = vmatmul.mubr.f32.gmra.mrb[0].mxu0 %v184
    %v327 = vpop.f32.mrb[0].mxu0
    %v328 = vadd.f32 %v131, %v327
    %v329 = vpop.f32.mrb[0].mxu0
    %330 = vmatprep.mubr.f32.mxu0 0.0
    %331 = vmatmul.mubr.f32.gmra.mrb[0].mxu0 %v187
    %v332 = vpop.f32.mrb[0].mxu0
    %v333 = vadd.f32 %v136, %v332
    %v334 = vpop.f32.mrb[0].mxu0
    %335 = vmatprep.mubr.f32.mxu0 0.0
    %336 = vmatmul.mubr.f32.gmra.mrb[0].mxu0 %v190
    %v337 = vpop.f32.mrb[0].mxu0
    %v338 = vadd.f32 %v141, %v337
    %v339 = vpop.f32.mrb[0].mxu0
    %340 = vdwg.mxu0
    %v341 = vtanh.pop %v263
    %v342 = vtanh.pop %v268
    %v343 = vtanh.pop %v273
    %v344 = vtanh.pop %v278
    %v345 = vtanh.pop %v283
    %v346 = vtanh.pop %v288
    %v347 = vtanh.pop %v293
    %v348 = vtanh.pop %v298
    %v349 = vtanh.pop %v303
    %v350 = vtanh.pop %v308
    %v351 = vtanh.pop %v313
    %v352 = vtanh.pop %v318
    %v353 = vld [vmem:[%s2] sm:$0xff]
    %v354 = vld [vmem:[%s2 + $0x8] sm:$0xff]
    %v355 = vld [vmem:[%s2 + $0x10] sm:$0xff]
    %v356 = vld [vmem:[%s2 + $0x18] sm:$0xff]
    %v357 = vld [vmem:[%s2 + $0x20] sm:$0xff]
    %v358 = vld [vmem:[%s2 + $0x28] sm:$0xff]
    %v359 = vld [vmem:[%s2 + $0x30] sm:$0xff]
    %v360 = vld [vmem:[%s2 + $0x38] sm:$0xff]
    %v361 = vld [vmem:[%s2 + $0x40] sm:$0xff]
    %v362 = vld [vmem:[%s2 + $0x48] sm:$0xff]
    %v363 = vld [vmem:[%s2 + $0x50] sm:$0xff]
    %v364 = vld [vmem:[%s2 + $0x58] sm:$0xff]
    %v365 = vld [vmem:[%s4 + $0x80] sm:$0xff]
    %v366 = vld [vmem:[%s4 + $0x88] sm:$0xff]
    %v367 = vld [vmem:[%s4 + $0x90] sm:$0xff]
    %v368 = vld [vmem:[%s4 + $0x98] sm:$0xff]
    %v369 = vld [vmem:[%s4 + $0xa0] sm:$0xff]
    %v370 = vld [vmem:[%s4 + $0xa8] sm:$0xff]
    %v371 = vld [vmem:[%s4 + $0xb0] sm:$0xff]
    %v372 = vld [vmem:[%s4 + $0xb8] sm:$0xff]
    %v373 = vld [vmem:[%s4 + $0xc0] sm:$0xff]
    %v374 = vld [vmem:[%s4 + $0xc8] sm:$0xff]
    %v375 = vld [vmem:[%s4 + $0xd0] sm:$0xff]
    %v376 = vld [vmem:[%s4 + $0xd8] sm:$0xff]
    %378 = vset.pattern.permute.xlu0 0
    %379 = vperm.xlu0 %378, %v365
    %v380 = vpop.permute.xlu0 %379
    %383 = vset.pattern.permute.xlu0 0
    %384 = vperm.xlu0 %383, %v366
    %v385 = vpop.permute.xlu0 %384
    %388 = vset.pattern.permute.xlu0 0
    %389 = vperm.xlu0 %388, %v367
    %v390 = vpop.permute.xlu0 %389
    %393 = vset.pattern.permute.xlu0 0
    %394 = vperm.xlu0 %393, %v368
    %v395 = vpop.permute.xlu0 %394
    %398 = vset.pattern.permute.xlu0 0
    %399 = vperm.xlu0 %398, %v369
    %v400 = vpop.permute.xlu0 %399
    %403 = vset.pattern.permute.xlu0 0
    %404 = vperm.xlu0 %403, %v370
    %v405 = vpop.permute.xlu0 %404
    %408 = vset.pattern.permute.xlu0 0
    %409 = vperm.xlu0 %408, %v371
    %v410 = vpop.permute.xlu0 %409
    %413 = vset.pattern.permute.xlu0 0
    %414 = vperm.xlu0 %413, %v372
    %v415 = vpop.permute.xlu0 %414
    %418 = vset.pattern.permute.xlu0 0
    %419 = vperm.xlu0 %418, %v373
    %v420 = vpop.permute.xlu0 %419
    %423 = vset.pattern.permute.xlu0 0
    %424 = vperm.xlu0 %423, %v374
    %v425 = vpop.permute.xlu0 %424
    %428 = vset.pattern.permute.xlu0 0
    %429 = vperm.xlu0 %428, %v375
    %v430 = vpop.permute.xlu0 %429
    %433 = vset.pattern.permute.xlu0 0
    %434 = vperm.xlu0 %433, %v376
    %v435 = vpop.permute.xlu0 %434
    %vm437 = vcmask 785408
    %v439 = vsel %vm437, %v353, 0
    %v442 = vsel %vm437, %v354, 0
    %v445 = vsel %vm437, %v355, 0
    %v448 = vsel %vm437, %v356, 0
    %v451 = vsel %vm437, %v357, 0
    %v454 = vsel %vm437, %v358, 0
    %v457 = vsel %vm437, %v359, 0
    %v460 = vsel %vm437, %v360, 0
    %v463 = vsel %vm437, %v361, 0
    %v466 = vsel %vm437, %v362, 0
    %v469 = vsel %vm437, %v363, 0
    %v472 = vsel %vm437, %v364, 0
    %474 = vmatprep.subr.mxu0 0.0
    %475 = vmatpush1.msra.mxu0 %v341
    %476 = vmatprep.subr.mxu0 0.0
    %477 = vmatpush1.msra.mxu0 %v342
    %478 = vmatprep.subr.mxu0 0.0
    %479 = vmatpush1.msra.mxu0 %v343
    %480 = vmatprep.subr.mxu0 0.0
    %481 = vmatpush1.msra.mxu0 %v344
    %482 = vmatprep.subr.mxu0 0.0
    %483 = vmatpush1.msra.mxu0 %v345
    %484 = vmatprep.subr.mxu0 0.0
    %485 = vmatpush1.msra.mxu0 %v346
    %486 = vmatprep.subr.mxu0 0.0
    %487 = vmatpush1.msra.mxu0 %v347
    %488 = vmatprep.subr.mxu0 0.0
    %489 = vmatpush1.msra.mxu0 %v348
    %490 = vmatprep.subr.mxu0 0.0
    %491 = vmatpush1.msra.mxu0 %v349
    %492 = vmatprep.subr.mxu0 0.0
    %493 = vmatpush1.msra.mxu0 %v350
    %494 = vmatprep.subr.mxu0 0.0
    %495 = vmatpush1.msra.mxu0 %v351
    %496 = vmatprep.subr.mxu0 0.0
    %497 = vmatpush1.msra.mxu0 %v352
    %498 = vmatprep.subr.mxu0 0.0
    %499 = vmatpush1.msra.mxu0 0.0
    %500 = vmatprep.subr.mxu0 0.0
    %501 = vmatpush1.msra.mxu0 0.0
    %502 = vmatprep.subr.mxu0 0.0
    %503 = vmatpush1.msra.mxu0 0.0
    %504 = vmatprep.subr.mxu0 0.0
    %505 = vmatpush1.msra.mxu0 0.0
    %506 = vmatprep.subr.mxu0 0.0
    %507 = vmatpush1.msra.mxu0 0.0
    %508 = vmatprep.subr.mxu0 0.0
    %509 = vmatpush1.msra.mxu0 0.0
    %510 = vmatprep.subr.mxu0 0.0
    %511 = vmatpush1.msra.mxu0 0.0
    %512 = vmatprep.subr.mxu0 0.0
    %513 = vmatpush1.msra.mxu0 0.0
    %514 = vmatprep.subr.mxu0 0.0
    %515 = vmatpush1.msra.mxu0 0.0
    %516 = vmatprep.subr.mxu0 0.0
    %517 = vmatpush1.msra.mxu0 0.0
    %518 = vmatprep.subr.mxu0 0.0
    %519 = vmatpush1.msra.mxu0 0.0
    %520 = vmatprep.subr.mxu0 0.0
    %521 = vmatpush1.msra.mxu0 0.0
    %522 = vmatprep.subr.mxu0 0.0
    %523 = vmatpush1.msra.mxu0 0.0
    %524 = vmatprep.subr.mxu0 0.0
    %525 = vmatpush1.msra.mxu0 0.0
    %526 = vmatprep.subr.mxu0 0.0
    %527 = vmatpush1.msra.mxu0 0.0
    %528 = vmatprep.subr.mxu0 0.0
    %529 = vmatpush1.msra.mxu0 0.0
    %530 = vmatprep.subr.mxu0 0.0
    %531 = vmatpush1.msra.mxu0 0.0
    %532 = vmatprep.subr.mxu0 0.0
    %533 = vmatpush1.msra.mxu0 0.0
    %534 = vmatprep.subr.mxu0 0.0
    %535 = vmatpush1.msra.mxu0 0.0
    %536 = vmatprep.subr.mxu0 0.0
    %537 = vmatpush1.msra.mxu0 0.0
    %538 = vmatprep.mubr.f32.mxu0 0.0
    %539 = vmatmul.mubr.f32.gmra.mrb[0].mxu0 %v439
    %v540 = vpop.f32.mrb[0].mxu0
    %v541 = vadd.f32 %v380, %v540
    %v542 = vpop.f32.mrb[0].mxu0
    %543 = vmatprep.mubr.f32.mxu0 0.0
    %544 = vmatmul.mubr.f32.gmra.mrb[0].mxu0 %v442
    %v545 = vpop.f32.mrb[0].mxu0
    %v546 = vadd.f32 %v385, %v545
    %v547 = vpop.f32.mrb[0].mxu0
    %548 = vmatprep.mubr.f32.mxu0 0.0
    %549 = vmatmul.mubr.f32.gmra.mrb[0].mxu0 %v445
    %v550 = vpop.f32.mrb[0].mxu0
    %v551 = vadd.f32 %v390, %v550
    %v552 = vpop.f32.mrb[0].mxu0
    %553 = vmatprep.mubr.f32.mxu0 0.0
    %554 = vmatmul.mubr.f32.gmra.mrb[0].mxu0 %v448
    %v555 = vpop.f32.mrb[0].mxu0
    %v556 = vadd.f32 %v395, %v555
    %v557 = vpop.f32.mrb[0].mxu0
    %558 = vmatprep.mubr.f32.mxu0 0.0
    %559 = vmatmul.mubr.f32.gmra.mrb[0].mxu0 %v451
    %v560 = vpop.f32.mrb[0].mxu0
    %v561 = vadd.f32 %v400, %v560
    %v562 = vpop.f32.mrb[0].mxu0
    %563 = vmatprep.mubr.f32.mxu0 0.0
    %564 = vmatmul.mubr.f32.gmra.mrb[0].mxu0 %v454
    %v565 = vpop.f32.mrb[0].mxu0
    %v566 = vadd.f32 %v405, %v565
    %v567 = vpop.f32.mrb[0].mxu0
    %568 = vmatprep.mubr.f32.mxu0 0.0
    %569 = vmatmul.mubr.f32.gmra.mrb[0].mxu0 %v457
    %v570 = vpop.f32.mrb[0].mxu0
    %v571 = vadd.f32 %v410, %v570
    %v572 = vpop.f32.mrb[0].mxu0
    %573 = vmatprep.mubr.f32.mxu0 0.0
    %574 = vmatmul.mubr.f32.gmra.mrb[0].mxu0 %v460
    %v575 = vpop.f32.mrb[0].mxu0
    %v576 = vadd.f32 %v415, %v575
    %v577 = vpop.f32.mrb[0].mxu0
    %578 = vmatprep.mubr.f32.mxu0 0.0
    %579 = vmatmul.mubr.f32.gmra.mrb[0].mxu0 %v463
    %v580 = vpop.f32.mrb[0].mxu0
    %v581 = vadd.f32 %v420, %v580
    %v582 = vpop.f32.mrb[0].mxu0
    %583 = vmatprep.mubr.f32.mxu0 0.0
    %584 = vmatmul.mubr.f32.gmra.mrb[0].mxu0 %v466
    %v585 = vpop.f32.mrb[0].mxu0
    %v586 = vadd.f32 %v425, %v585
    %v587 = vpop.f32.mrb[0].mxu0
    %588 = vmatprep.mubr.f32.mxu0 0.0
    %589 = vmatmul.mubr.f32.gmra.mrb[0].mxu0 %v469
    %v590 = vpop.f32.mrb[0].mxu0
    %v591 = vadd.f32 %v430, %v590
    %v592 = vpop.f32.mrb[0].mxu0
    %593 = vmatprep.mubr.f32.mxu0 0.0
    %594 = vmatmul.mubr.f32.gmra.mrb[0].mxu0 %v472
    %v595 = vpop.f32.mrb[0].mxu0
    %v596 = vadd.f32 %v435, %v595
    %v597 = vpop.f32.mrb[0].mxu0
    %598 = vdwg.mxu0
    %v599 = vtanh.pop %v541
    %v600 = vtanh.pop %v546
    %v601 = vtanh.pop %v551
    %v602 = vtanh.pop %v556
    %v603 = vtanh.pop %v561
    %v604 = vtanh.pop %v566
    %v605 = vtanh.pop %v571
    %v606 = vtanh.pop %v576
    %v607 = vtanh.pop %v581
    %v608 = vtanh.pop %v586
    %v609 = vtanh.pop %v591
    %v610 = vtanh.pop %v596
    %v611 = vld [vmem:[%s3] sm:$0xff]
    %v612 = vld [vmem:[%s3 + $0x8] sm:$0xff]
    %v613 = vld [vmem:[%s3 + $0x10] sm:$0xff]
    %v614 = vld [vmem:[%s3 + $0x18] sm:$0xff]
    %v615 = vld [vmem:[%s3 + $0x20] sm:$0xff]
    %v616 = vld [vmem:[%s3 + $0x28] sm:$0xff]
    %v617 = vld [vmem:[%s4 + $0xe0] sm:$0xff]
    %v618 = vld [vmem:[%s4 + $0xe8] sm:$0xff]
    %v619 = vld [vmem:[%s4 + $0xf0] sm:$0xff]
    %v620 = vld [vmem:[%s4 + $0xf8] sm:$0xff]
    %v621 = vld [vmem:[%s4 + $0x100] sm:$0xff]
    %v622 = vld [vmem:[%s4 + $0x108] sm:$0xff]
    %624 = vset.pattern.permute.xlu0 0
    %625 = vperm.xlu0 %624, %v617
    %v626 = vpop.permute.xlu0 %625
    %629 = vset.pattern.permute.xlu0 0
    %630 = vperm.xlu0 %629, %v618
    %v631 = vpop.permute.xlu0 %630
    %634 = vset.pattern.permute.xlu0 0
    %635 = vperm.xlu0 %634, %v619
    %v636 = vpop.permute.xlu0 %635
    %639 = vset.pattern.permute.xlu0 0
    %640 = vperm.xlu0 %639, %v620
    %v641 = vpop.permute.xlu0 %640
    %644 = vset.pattern.permute.xlu0 0
    %645 = vperm.xlu0 %644, %v621
    %v646 = vpop.permute.xlu0 %645
    %649 = vset.pattern.permute.xlu0 0
    %650 = vperm.xlu0 %649, %v622
    %v651 = vpop.permute.xlu0 %650
    %v654 = vsel %vm437, %v611, 0
    %v657 = vsel %vm437, %v612, 0
    %v660 = vsel %vm437, %v613, 0
    %v663 = vsel %vm437, %v614, 0
    %v666 = vsel %vm437, %v615, 0
    %v669 = vsel %vm437, %v616, 0
    %671 = vmatprep.subr.mxu0 0.0
    %672 = vmatpush1.msra.mxu0 %v599
    %673 = vmatprep.subr.mxu0 0.0
    %674 = vmatpush1.msra.mxu0 %v600
    %675 = vmatprep.subr.mxu0 0.0
    %676 = vmatpush1.msra.mxu0 %v601
    %677 = vmatprep.subr.mxu0 0.0
    %678 = vmatpush1.msra.mxu0 %v602
    %679 = vmatprep.subr.mxu0 0.0
    %680 = vmatpush1.msra.mxu0 %v603
    %681 = vmatprep.subr.mxu0 0.0
    %682 = vmatpush1.msra.mxu0 %v604
    %683 = vmatprep.subr.mxu0 0.0
    %684 = vmatpush1.msra.mxu0 %v605
    %685 = vmatprep.subr.mxu0 0.0
    %686 = vmatpush1.msra.mxu0 %v606
    %687 = vmatprep.subr.mxu0 0.0
    %688 = vmatpush1.msra.mxu0 %v607
    %689 = vmatprep.subr.mxu0 0.0
    %690 = vmatpush1.msra.mxu0 %v608
    %691 = vmatprep.subr.mxu0 0.0
    %692 = vmatpush1.msra.mxu0 %v609
    %693 = vmatprep.subr.mxu0 0.0
    %694 = vmatpush1.msra.mxu0 %v610
    %695 = vmatprep.subr.mxu0 0.0
    %696 = vmatpush1.msra.mxu0 0.0
    %697 = vmatprep.subr.mxu0 0.0
    %698 = vmatpush1.msra.mxu0 0.0
    %699 = vmatprep.subr.mxu0 0.0
    %700 = vmatpush1.msra.mxu0 0.0
    %701 = vmatprep.subr.mxu0 0.0
    %702 = vmatpush1.msra.mxu0 0.0
    %703 = vmatprep.subr.mxu0 0.0
    %704 = vmatpush1.msra.mxu0 0.0
    %705 = vmatprep.subr.mxu0 0.0
    %706 = vmatpush1.msra.mxu0 0.0
    %707 = vmatprep.subr.mxu0 0.0
    %708 = vmatpush1.msra.mxu0 0.0
    %709 = vmatprep.subr.mxu0 0.0
    %710 = vmatpush1.msra.mxu0 0.0
    %711 = vmatprep.subr.mxu0 0.0
    %712 = vmatpush1.msra.mxu0 0.0
    %713 = vmatprep.subr.mxu0 0.0
    %714 = vmatpush1.msra.mxu0 0.0
    %715 = vmatprep.subr.mxu0 0.0
    %716 = vmatpush1.msra.mxu0 0.0
    %717 = vmatprep.subr.mxu0 0.0
    %718 = vmatpush1.msra.mxu0 0.0
    %719 = vmatprep.subr.mxu0 0.0
    %720 = vmatpush1.msra.mxu0 0.0
    %721 = vmatprep.subr.mxu0 0.0
    %722 = vmatpush1.msra.mxu0 0.0
    %723 = vmatprep.subr.mxu0 0.0
    %724 = vmatpush1.msra.mxu0 0.0
    %725 = vmatprep.subr.mxu0 0.0
    %726 = vmatpush1.msra.mxu0 0.0
    %727 = vmatprep.subr.mxu0 0.0
    %728 = vmatpush1.msra.mxu0 0.0
    %729 = vmatprep.subr.mxu0 0.0
    %730 = vmatpush1.msra.mxu0 0.0
    %731 = vmatprep.subr.mxu0 0.0
    %732 = vmatpush1.msra.mxu0 0.0
    %733 = vmatprep.subr.mxu0 0.0
    %734 = vmatpush1.msra.mxu0 0.0
    %735 = vmatprep.mubr.f32.mxu0 0.0
    %736 = vmatmul.mubr.f32.gmra.mrb[0].mxu0 %v654
    %v737 = vpop.f32.mrb[0].mxu0
    %v738 = vadd.f32 %v626, %v737
    %v739 = vpop.f32.mrb[0].mxu0
    %740 = vmatprep.mubr.f32.mxu0 0.0
    %741 = vmatmul.mubr.f32.gmra.mrb[0].mxu0 %v657
    %v742 = vpop.f32.mrb[0].mxu0
    %v743 = vadd.f32 %v631, %v742
    %v744 = vpop.f32.mrb[0].mxu0
    %745 = vmatprep.mubr.f32.mxu0 0.0
    %746 = vmatmul.mubr.f32.gmra.mrb[0].mxu0 %v660
    %v747 = vpop.f32.mrb[0].mxu0
    %v748 = vadd.f32 %v636, %v747
    %v749 = vpop.f32.mrb[0].mxu0
    %750 = vmatprep.mubr.f32.mxu0 0.0
    %751 = vmatmul.mubr.f32.gmra.mrb[0].mxu0 %v663
    %v752 = vpop.f32.mrb[0].mxu0
    %v753 = vadd.f32 %v641, %v752
    %v754 = vpop.f32.mrb[0].mxu0
    %755 = vmatprep.mubr.f32.mxu0 0.0
    %756 = vmatmul.mubr.f32.gmra.mrb[0].mxu0 %v666
    %v757 = vpop.f32.mrb[0].mxu0
    %v758 = vadd.f32 %v646, %v757
    %v759 = vpop.f32.mrb[0].mxu0
    %760 = vmatprep.mubr.f32.mxu0 0.0
    %761 = vmatmul.mubr.f32.gmra.mrb[0].mxu0 %v669
    %v762 = vpop.f32.mrb[0].mxu0
    %v763 = vadd.f32 %v651, %v762
    %v764 = vpop.f32.mrb[0].mxu0
    %765 = vdwg.mxu0
    %v766 = vadd.f32 %v738, %v323
    %v767 = vadd.f32 %v743, %v328
    %v768 = vadd.f32 %v748, %v333
    %v769 = vadd.f32 %v753, %v338
    %v770 = vld [vmem:[%s5] sm:$0xff]
    %v771 = vld [vmem:[%s5 + $0x8] sm:$0xff]
    %v772 = vld [vmem:[%s5 + $0x10] sm:$0xff]
    %v773 = vld [vmem:[%s5 + $0x18] sm:$0xff]
    %v774 = vld [vmem:[%s5 + $0x20] sm:$0xf]
    %vm775 = vcmask 261120
    %v777 = vsel %vm775, %v770, 0
    %v780 = vsel %vm775, %v771, 0
    %v783 = vsel %vm775, %v772, 0
    %v786 = vsel %vm775, %v773, 0
    %v789 = vsel %vm775, %v774, 0
    %791 = vmatprep.subr.mxu0 0.0
    %792 = vmatpush1.msra.mxu0 %v766
    %793 = vmatprep.subr.mxu0 0.0
    %794 = vmatpush1.msra.mxu0 %v767
    %795 = vmatprep.subr.mxu0 0.0
    %796 = vmatpush1.msra.mxu0 %v768
    %797 = vmatprep.subr.mxu0 0.0
    %798 = vmatpush1.msra.mxu0 %v769
    %799 = vmatprep.subr.mxu0 0.0
    %800 = vmatpush1.msra.mxu0 0.0
    %801 = vmatprep.subr.mxu0 0.0
    %802 = vmatpush1.msra.mxu0 0.0
    %803 = vmatprep.subr.mxu0 0.0
    %804 = vmatpush1.msra.mxu0 0.0
    %805 = vmatprep.subr.mxu0 0.0
    %806 = vmatpush1.msra.mxu0 0.0
    %807 = vmatprep.subr.mxu0 0.0
    %808 = vmatpush1.msra.mxu0 0.0
    %809 = vmatprep.subr.mxu0 0.0
    %810 = vmatpush1.msra.mxu0 0.0
    %811 = vmatprep.subr.mxu0 0.0
    %812 = vmatpush1.msra.mxu0 0.0
    %813 = vmatprep.subr.mxu0 0.0
    %814 = vmatpush1.msra.mxu0 0.0
    %815 = vmatprep.subr.mxu0 0.0
    %816 = vmatpush1.msra.mxu0 0.0
    %817 = vmatprep.subr.mxu0 0.0
    %818 = vmatpush1.msra.mxu0 0.0
    %819 = vmatprep.subr.mxu0 0.0
    %820 = vmatpush1.msra.mxu0 0.0
    %821 = vmatprep.subr.mxu0 0.0
    %822 = vmatpush1.msra.mxu0 0.0
    %823 = vmatprep.subr.mxu0 0.0
    %824 = vmatpush1.msra.mxu0 0.0
    %825 = vmatprep.subr.mxu0 0.0
    %826 = vmatpush1.msra.mxu0 0.0
    %827 = vmatprep.subr.mxu0 0.0
    %828 = vmatpush1.msra.mxu0 0.0
    %829 = vmatprep.subr.mxu0 0.0
    %830 = vmatpush1.msra.mxu0 0.0
    %831 = vmatprep.subr.mxu0 0.0
    %832 = vmatpush1.msra.mxu0 0.0
    %833 = vmatprep.subr.mxu0 0.0
    %834 = vmatpush1.msra.mxu0 0.0
    %835 = vmatprep.subr.mxu0 0.0
    %836 = vmatpush1.msra.mxu0 0.0
    %837 = vmatprep.subr.mxu0 0.0
    %838 = vmatpush1.msra.mxu0 0.0
    %839 = vmatprep.subr.mxu0 0.0
    %840 = vmatpush1.msra.mxu0 0.0
    %841 = vmatprep.subr.mxu0 0.0
    %842 = vmatpush1.msra.mxu0 0.0
    %843 = vmatprep.subr.mxu0 0.0
    %844 = vmatpush1.msra.mxu0 0.0
    %845 = vmatprep.subr.mxu0 0.0
    %846 = vmatpush1.msra.mxu0 0.0
    %847 = vmatprep.subr.mxu0 0.0
    %848 = vmatpush1.msra.mxu0 0.0
    %849 = vmatprep.subr.mxu0 0.0
    %850 = vmatpush1.msra.mxu0 0.0
    %851 = vmatprep.subr.mxu0 0.0
    %852 = vmatpush1.msra.mxu0 0.0
    %853 = vmatprep.subr.mxu0 0.0
    %854 = vmatpush1.msra.mxu0 0.0
    %855 = vmatprep.mubr.f32.mxu0 0.0
    %856 = vmatmul.mubr.f32.gmra.mrb[0].mxu0 %v777
    %v857 = vpop.f32.mrb[0].mxu0
    %v858 = vadd.f32 0.0, %v857
    %v859 = vpop.f32.mrb[0].mxu0
    %860 = vmatprep.mubr.f32.mxu0 0.0
    %861 = vmatmul.mubr.f32.gmra.mrb[0].mxu0 %v780
    %v862 = vpop.f32.mrb[0].mxu0
    %v863 = vadd.f32 0.0, %v862
    %v864 = vpop.f32.mrb[0].mxu0
    %865 = vmatprep.mubr.f32.mxu0 0.0
    %866 = vmatmul.mubr.f32.gmra.mrb[0].mxu0 %v783
    %v867 = vpop.f32.mrb[0].mxu0
    %v868 = vadd.f32 0.0, %v867
    %v869 = vpop.f32.mrb[0].mxu0
    %870 = vmatprep.mubr.f32.mxu0 0.0
    %871 = vmatmul.mubr.f32.gmra.mrb[0].mxu0 %v786
    %v872 = vpop.f32.mrb[0].mxu0
    %v873 = vadd.f32 0.0, %v872
    %v874 = vpop.f32.mrb[0].mxu0
    %875 = vmatprep.mubr.f32.mxu0 0.0
    %876 = vmatmul.mubr.f32.gmra.mrb[0].mxu0 %v789
    %v877 = vpop.f32.mrb[0].mxu0
    %v878 = vadd.f32 0.0, %v877
    %v879 = vpop.f32.mrb[0].mxu0
    %880 = vdwg.mxu0
    %v881 = vmul.f32 %v599, %v599
    %v882 = vmul.f32 %v600, %v600
    %v883 = vmul.f32 %v601, %v601
    %v884 = vmul.f32 %v602, %v602
    %v885 = vsub.f32 1.0, %v881
    %v886 = vsub.f32 1.0, %v882
    %v887 = vsub.f32 1.0, %v883
    %v888 = vsub.f32 1.0, %v884
    %v889 = vmul.f32 %v858, %v885
    %v890 = vmul.f32 %v863, %v886
    %v891 = vmul.f32 %v868, %v887
    %v892 = vmul.f32 %v873, %v888
    %v893 = vld [vmem:[%s5 + $0x28] sm:$0xff]
    %v894 = vld [vmem:[%s5 + $0x30] sm:$0xff]
    %v895 = vld [vmem:[%s5 + $0x38] sm:$0xff]
    %v896 = vld [vmem:[%s5 + $0x40] sm:$0xff]
    %v898 = vsel %vm775, %v893, 0
    %v901 = vsel %vm775, %v894, 0
    %v904 = vsel %vm775, %v895, 0
    %v907 = vsel %vm775, %v896, 0
    %909 = vmatprep.subr.mxu0 0.0
    %910 = vmatpush1.msra.mxu0 %v889
    %911 = vmatprep.subr.mxu0 0.0
    %912 = vmatpush1.msra.mxu0 %v890
    %913 = vmatprep.subr.mxu0 0.0
    %914 = vmatpush1.msra.mxu0 %v891
    %915 = vmatprep.subr.mxu0 0.0
    %916 = vmatpush1.msra.mxu0 %v892
    %917 = vmatprep.subr.mxu0 0.0
    %918 = vmatpush1.msra.mxu0 0.0
    %919 = vmatprep.subr.mxu0 0.0
    %920 = vmatpush1.msra.mxu0 0.0
    %921 = vmatprep.subr.mxu0 0.0
    %922 = vmatpush1.msra.mxu0 0.0
    %923 = vmatprep.subr.mxu0 0.0
    %924 = vmatpush1.msra.mxu0 0.0
    %925 = vmatprep.subr.mxu0 0.0
    %926 = vmatpush1.msra.mxu0 0.0
    %927 = vmatprep.subr.mxu0 0.0
    %928 = vmatpush1.msra.mxu0 0.0
    %929 = vmatprep.subr.mxu0 0.0
    %930 = vmatpush1.msra.mxu0 0.0
    %931 = vmatprep.subr.mxu0 0.0
    %932 = vmatpush1.msra.mxu0 0.0
    %933 = vmatprep.subr.mxu0 0.0
    %934 = vmatpush1.msra.mxu0 0.0
    %935 = vmatprep.subr.mxu0 0.0
    %936 = vmatpush1.msra.mxu0 0.0
    %937 = vmatprep.subr.mxu0 0.0
    %938 = vmatpush1.msra.mxu0 0.0
    %939 = vmatprep.subr.mxu0 0.0
    %940 = vmatpush1.msra.mxu0 0.0
    %941 = vmatprep.subr.mxu0 0.0
    %942 = vmatpush1.msra.mxu0 0.0
    %943 = vmatprep.subr.mxu0 0.0
    %944 = vmatpush1.msra.mxu0 0.0
    %945 = vmatprep.subr.mxu0 0.0
    %946 = vmatpush1.msra.mxu0 0.0
    %947 = vmatprep.subr.mxu0 0.0
    %948 = vmatpush1.msra.mxu0 0.0
    %949 = vmatprep.subr.mxu0 0.0
    %950 = vmatpush1.msra.mxu0 0.0
    %951 = vmatprep.subr.mxu0 0.0
    %952 = vmatpush1.msra.mxu0 0.0
    %953 = vmatprep.subr.mxu0 0.0
    %954 = vmatpush1.msra.mxu0 0.0
    %955 = vmatprep.subr.mxu0 0.0
    %956 = vmatpush1.msra.mxu0 0.0
    %957 = vmatprep.subr.mxu0 0.0
    %958 = vmatpush1.msra.mxu0 0.0
    %959 = vmatprep.subr.mxu0 0.0
    %960 = vmatpush1.msra.mxu0 0.0
    %961 = vmatprep.subr.mxu0 0.0
    %962 = vmatpush1.msra.mxu0 0.0
    %963 = vmatprep.subr.mxu0 0.0
    %964 = vmatpush1.msra.mxu0 0.0
    %965 = vmatprep.subr.mxu0 0.0
    %966 = vmatpush1.msra.mxu0 0.0
    %967 = vmatprep.subr.mxu0 0.0
    %968 = vmatpush1.msra.mxu0 0.0
    %969 = vmatprep.subr.mxu0 0.0
    %970 = vmatpush1.msra.mxu0 0.0
    %971 = vmatprep.subr.mxu0 0.0
    %972 = vmatpush1.msra.mxu0 0.0
    %973 = vmatprep.mubr.f32.mxu0 0.0
    %974 = vmatmul.mubr.f32.gmra.mrb[0].mxu0 %v898
    %v975 = vpop.f32.mrb[0].mxu0
    %v976 = vadd.f32 0.0, %v975
    %v977 = vpop.f32.mrb[0].mxu0
    %978 = vmatprep.mubr.f32.mxu0 0.0
    %979 = vmatmul.mubr.f32.gmra.mrb[0].mxu0 %v901
    %v980 = vpop.f32.mrb[0].mxu0
    %v981 = vadd.f32 0.0, %v980
    %v982 = vpop.f32.mrb[0].mxu0
    %983 = vmatprep.mubr.f32.mxu0 0.0
    %984 = vmatmul.mubr.f32.gmra.mrb[0].mxu0 %v904
    %v985 = vpop.f32.mrb[0].mxu0
    %v986 = vadd.f32 0.0, %v985
    %v987 = vpop.f32.mrb[0].mxu0
    %988 = vmatprep.mubr.f32.mxu0 0.0
    %989 = vmatmul.mubr.f32.gmra.mrb[0].mxu0 %v907
    %v990 = vpop.f32.mrb[0].mxu0
    %v991 = vadd.f32 0.0, %v990
    %v992 = vpop.f32.mrb[0].mxu0
    %993 = vdwg.mxu0
    %v994 = vmul.f32 %v341, %v341
    %v995 = vmul.f32 %v342, %v342
    %v996 = vmul.f32 %v343, %v343
    %v997 = vmul.f32 %v344, %v344
    %v998 = vsub.f32 1.0, %v994
    %v999 = vsub.f32 1.0, %v995
    %v1000 = vsub.f32 1.0, %v996
    %v1001 = vsub.f32 1.0, %v997
    %v1002 = vmul.f32 %v976, %v998
    %v1003 = vmul.f32 %v981, %v999
    %v1004 = vmul.f32 %v986, %v1000
    %v1005 = vmul.f32 %v991, %v1001
    %v1006 = vmul.f32 %v30, 0.2
    %v1007 = vld [vmem:[%s5 + $0x48] sm:$0xf]
    %v1009 = vsel %vm775, %v1007, 0
    %1011 = vmatprep.subr.mxu0 0.0
    %1012 = vmatpush1.msra.mxu0 %v1002
    %1013 = vmatprep.subr.mxu0 0.0
    %1014 = vmatpush1.msra.mxu0 %v1003
    %1015 = vmatprep.subr.mxu0 0.0
    %1016 = vmatpush1.msra.mxu0 %v1004
    %1017 = vmatprep.subr.mxu0 0.0
    %1018 = vmatpush1.msra.mxu0 %v1005
    %1019 = vmatprep.subr.mxu0 0.0
    %1020 = vmatpush1.msra.mxu0 0.0
    %1021 = vmatprep.subr.mxu0 0.0
    %1022 = vmatpush1.msra.mxu0 0.0
    %1023 = vmatprep.subr.mxu0 0.0
    %1024 = vmatpush1.msra.mxu0 0.0
    %1025 = vmatprep.subr.mxu0 0.0
    %1026 = vmatpush1.msra.mxu0 0.0
    %1027 = vmatprep.subr.mxu0 0.0
    %1028 = vmatpush1.msra.mxu0 0.0
    %1029 = vmatprep.subr.mxu0 0.0
    %1030 = vmatpush1.msra.mxu0 0.0
    %1031 = vmatprep.subr.mxu0 0.0
    %1032 = vmatpush1.msra.mxu0 0.0
    %1033 = vmatprep.subr.mxu0 0.0
    %1034 = vmatpush1.msra.mxu0 0.0
    %1035 = vmatprep.subr.mxu0 0.0
    %1036 = vmatpush1.msra.mxu0 0.0
    %1037 = vmatprep.subr.mxu0 0.0
    %1038 = vmatpush1.msra.mxu0 0.0
    %1039 = vmatprep.subr.mxu0 0.0
    %1040 = vmatpush1.msra.mxu0 0.0
    %1041 = vmatprep.subr.mxu0 0.0
    %1042 = vmatpush1.msra.mxu0 0.0
    %1043 = vmatprep.subr.mxu0 0.0
    %1044 = vmatpush1.msra.mxu0 0.0
    %1045 = vmatprep.subr.mxu0 0.0
    %1046 = vmatpush1.msra.mxu0 0.0
    %1047 = vmatprep.subr.mxu0 0.0
    %1048 = vmatpush1.msra.mxu0 0.0
    %1049 = vmatprep.subr.mxu0 0.0
    %1050 = vmatpush1.msra.mxu0 0.0
    %1051 = vmatprep.subr.mxu0 0.0
    %1052 = vmatpush1.msra.mxu0 0.0
    %1053 = vmatprep.subr.mxu0 0.0
    %1054 = vmatpush1.msra.mxu0 0.0
    %1055 = vmatprep.subr.mxu0 0.0
    %1056 = vmatpush1.msra.mxu0 0.0
    %1057 = vmatprep.subr.mxu0 0.0
    %1058 = vmatpush1.msra.mxu0 0.0
    %1059 = vmatprep.subr.mxu0 0.0
    %1060 = vmatpush1.msra.mxu0 0.0
    %1061 = vmatprep.subr.mxu0 0.0
    %1062 = vmatpush1.msra.mxu0 0.0
    %1063 = vmatprep.subr.mxu0 0.0
    %1064 = vmatpush1.msra.mxu0 0.0
    %1065 = vmatprep.subr.mxu0 0.0
    %1066 = vmatpush1.msra.mxu0 0.0
    %1067 = vmatprep.subr.mxu0 0.0
    %1068 = vmatpush1.msra.mxu0 0.0
    %1069 = vmatprep.subr.mxu0 0.0
    %1070 = vmatpush1.msra.mxu0 0.0
    %1071 = vmatprep.subr.mxu0 0.0
    %1072 = vmatpush1.msra.mxu0 0.0
    %1073 = vmatprep.subr.mxu0 0.0
    %1074 = vmatpush1.msra.mxu0 0.0
    %1075 = vmatprep.mubr.f32.mxu0 0.0
    %1076 = vmatmul.mubr.f32.gmra.mrb[0].mxu0 %v1009
    %v1077 = vpop.f32.mrb[0].mxu0
    %v1078 = vadd.f32 0.0, %v1077
    %v1079 = vpop.f32.mrb[0].mxu0
    %1080 = vdwg.mxu0
    %v1081 = vadd.f32 %v1006, %v1078
    %v1082 = vadd.f32 %v1081, %v878
    %v1083 = vld [vmem:[%s6] sm:$0xf]
    %v1084 = vld [vmem:[%s6 + $0x4] sm:$0xf]
    %v1085 = vunpack.c.l.bf16 %v1083
    %v1086 = vunpack.c.l.bf16 %v1084
    %s1087 = scalar_lea.vmem %s6, 8
    %v1088 = vld [vmem:[%s1087] sm:$0xf]
    %v1089 = vld [vmem:[%s1087 + $0x4] sm:$0xf]
    %v1090 = vunpack.c.l.bf16 %v1088
    %v1091 = vunpack.c.l.bf16 %v1089
    %v1092 = vld [vmem:[%s7] sm:$0x3]
    %v1093 = vunpack.c.l.bf16 %v1092
    %s1094 = scalar_lea.vmem %s7, 2
    %v1095 = vld [vmem:[%s1094] sm:$0x3]
    %v1096 = vunpack.c.l.bf16 %v1095
    %s1097 = scalar_lea.vmem %s7, 4
    %v1098 = vld [vmem:[%s1097] sm:$0x3]
    %v1099 = vunpack.c.l.bf16 %v1098
    %s1100 = scalar_lea.vmem %s7, 6
    %v1101 = vld [vmem:[%s1100] sm:$0x3]
    %v1102 = vunpack.c.l.bf16 %v1101
    %v1104 = vsel %vm143, %v1085, 0
    %v1107 = vsel %vm143, %v1086, 0
    %v1110 = vsel %vm192, %v1082, 0
    %1112 = vmatprep.subr.mxu0 0.0
    %1113 = vmatpush1.msra.mxu0 %v1110
    %1114 = vmatprep.subr.mxu0 0.0
    %1115 = vmatpush1.msra.mxu0 0.0
    %1116 = vmatprep.subr.mxu0 0.0
    %1117 = vmatpush1.msra.mxu0 0.0
    %1118 = vmatprep.subr.mxu0 0.0
    %1119 = vmatpush1.msra.mxu0 0.0
    %1120 = vmatprep.subr.mxu0 0.0
    %1121 = vmatpush1.msra.mxu0 0.0
    %1122 = vmatprep.subr.mxu0 0.0
    %1123 = vmatpush1.msra.mxu0 0.0
    %1124 = vmatprep.subr.mxu0 0.0
    %1125 = vmatpush1.msra.mxu0 0.0
    %1126 = vmatprep.subr.mxu0 0.0
    %1127 = vmatpush1.msra.mxu0 0.0
    %1128 = vmatprep.subr.mxu0 0.0
    %1129 = vmatpush1.msra.mxu0 0.0
    %1130 = vmatprep.subr.mxu0 0.0
    %1131 = vmatpush1.msra.mxu0 0.0
    %1132 = vmatprep.subr.mxu0 0.0
    %1133 = vmatpush1.msra.mxu0 0.0
    %1134 = vmatprep.subr.mxu0 0.0
    %1135 = vmatpush1.msra.mxu0 0.0
    %1136 = vmatprep.subr.mxu0 0.0
    %1137 = vmatpush1.msra.mxu0 0.0
    %1138 = vmatprep.subr.mxu0 0.0
    %1139 = vmatpush1.msra.mxu0 0.0
    %1140 = vmatprep.subr.mxu0 0.0
    %1141 = vmatpush1.msra.mxu0 0.0
    %1142 = vmatprep.subr.mxu0 0.0
    %1143 = vmatpush1.msra.mxu0 0.0
    %1144 = vmatprep.subr.mxu0 0.0
    %1145 = vmatpush1.msra.mxu0 0.0
    %1146 = vmatprep.subr.mxu0 0.0
    %1147 = vmatpush1.msra.mxu0 0.0
    %1148 = vmatprep.subr.mxu0 0.0
    %1149 = vmatpush1.msra.mxu0 0.0
    %1150 = vmatprep.subr.mxu0 0.0
    %1151 = vmatpush1.msra.mxu0 0.0
    %1152 = vmatprep.subr.mxu0 0.0
    %1153 = vmatpush1.msra.mxu0 0.0
    %1154 = vmatprep.subr.mxu0 0.0
    %1155 = vmatpush1.msra.mxu0 0.0
    %1156 = vmatprep.subr.mxu0 0.0
    %1157 = vmatpush1.msra.mxu0 0.0
    %1158 = vmatprep.subr.mxu0 0.0
    %1159 = vmatpush1.msra.mxu0 0.0
    %1160 = vmatprep.subr.mxu0 0.0
    %1161 = vmatpush1.msra.mxu0 0.0
    %1162 = vmatprep.subr.mxu0 0.0
    %1163 = vmatpush1.msra.mxu0 0.0
    %1164 = vmatprep.subr.mxu0 0.0
    %1165 = vmatpush1.msra.mxu0 0.0
    %1166 = vmatprep.subr.mxu0 0.0
    %1167 = vmatpush1.msra.mxu0 0.0
    %1168 = vmatprep.subr.mxu0 0.0
    %1169 = vmatpush1.msra.mxu0 0.0
    %1170 = vmatprep.subr.mxu0 0.0
    %1171 = vmatpush1.msra.mxu0 0.0
    %1172 = vmatprep.subr.mxu0 0.0
    %1173 = vmatpush1.msra.mxu0 0.0
    %1174 = vmatprep.subr.mxu0 0.0
    %1175 = vmatpush1.msra.mxu0 0.0
    %1176 = vmatprep.mubr.f32.mxu0 0.0
    %1177 = vmatmul.mubr.f32.gmra.mrb[0].mxu0 %v1104
    %v1178 = vpop.f32.mrb[0].mxu0
    %v1179 = vadd.f32 0.0, %v1178
    %v1180 = vpop.f32.mrb[0].mxu0
    %1181 = vmatprep.mubr.f32.mxu0 0.0
    %1182 = vmatmul.mubr.f32.gmra.mrb[0].mxu0 %v1107
    %v1183 = vpop.f32.mrb[0].mxu0
    %v1184 = vadd.f32 0.0, %v1183
    %v1185 = vpop.f32.mrb[0].mxu0
    %1186 = vdwg.mxu0
    %v1188 = vsel %vm143, %v1090, 0
    %v1191 = vsel %vm143, %v1091, 0
    %1193 = vmatprep.subr.mxu0 0.0
    %1194 = vmatpush1.msra.mxu0 %v1110
    %1195 = vmatprep.subr.mxu0 0.0
    %1196 = vmatpush1.msra.mxu0 0.0
    %1197 = vmatprep.subr.mxu0 0.0
    %1198 = vmatpush1.msra.mxu0 0.0
    %1199 = vmatprep.subr.mxu0 0.0
    %1200 = vmatpush1.msra.mxu0 0.0
    %1201 = vmatprep.subr.mxu0 0.0
    %1202 = vmatpush1.msra.mxu0 0.0
    %1203 = vmatprep.subr.mxu0 0.0
    %1204 = vmatpush1.msra.mxu0 0.0
    %1205 = vmatprep.subr.mxu0 0.0
    %1206 = vmatpush1.msra.mxu0 0.0
    %1207 = vmatprep.subr.mxu0 0.0
    %1208 = vmatpush1.msra.mxu0 0.0
    %1209 = vmatprep.subr.mxu0 0.0
    %1210 = vmatpush1.msra.mxu0 0.0
    %1211 = vmatprep.subr.mxu0 0.0
    %1212 = vmatpush1.msra.mxu0 0.0
    %1213 = vmatprep.subr.mxu0 0.0
    %1214 = vmatpush1.msra.mxu0 0.0
    %1215 = vmatprep.subr.mxu0 0.0
    %1216 = vmatpush1.msra.mxu0 0.0
    %1217 = vmatprep.subr.mxu0 0.0
    %1218 = vmatpush1.msra.mxu0 0.0
    %1219 = vmatprep.subr.mxu0 0.0
    %1220 = vmatpush1.msra.mxu0 0.0
    %1221 = vmatprep.subr.mxu0 0.0
    %1222 = vmatpush1.msra.mxu0 0.0
    %1223 = vmatprep.subr.mxu0 0.0
    %1224 = vmatpush1.msra.mxu0 0.0
    %1225 = vmatprep.subr.mxu0 0.0
    %1226 = vmatpush1.msra.mxu0 0.0
    %1227 = vmatprep.subr.mxu0 0.0
    %1228 = vmatpush1.msra.mxu0 0.0
    %1229 = vmatprep.subr.mxu0 0.0
    %1230 = vmatpush1.msra.mxu0 0.0
    %1231 = vmatprep.subr.mxu0 0.0
    %1232 = vmatpush1.msra.mxu0 0.0
    %1233 = vmatprep.subr.mxu0 0.0
    %1234 = vmatpush1.msra.mxu0 0.0
    %1235 = vmatprep.subr.mxu0 0.0
    %1236 = vmatpush1.msra.mxu0 0.0
    %1237 = vmatprep.subr.mxu0 0.0
    %1238 = vmatpush1.msra.mxu0 0.0
    %1239 = vmatprep.subr.mxu0 0.0
    %1240 = vmatpush1.msra.mxu0 0.0
    %1241 = vmatprep.subr.mxu0 0.0
    %1242 = vmatpush1.msra.mxu0 0.0
    %1243 = vmatprep.subr.mxu0 0.0
    %1244 = vmatpush1.msra.mxu0 0.0
    %1245 = vmatprep.subr.mxu0 0.0
    %1246 = vmatpush1.msra.mxu0 0.0
    %1247 = vmatprep.subr.mxu0 0.0
    %1248 = vmatpush1.msra.mxu0 0.0
    %1249 = vmatprep.subr.mxu0 0.0
    %1250 = vmatpush1.msra.mxu0 0.0
    %1251 = vmatprep.subr.mxu0 0.0
    %1252 = vmatpush1.msra.mxu0 0.0
    %1253 = vmatprep.subr.mxu0 0.0
    %1254 = vmatpush1.msra.mxu0 0.0
    %1255 = vmatprep.subr.mxu0 0.0
    %1256 = vmatpush1.msra.mxu0 0.0
    %1257 = vmatprep.mubr.f32.mxu0 0.0
    %1258 = vmatmul.mubr.f32.gmra.mrb[0].mxu0 %v1188
    %v1259 = vpop.f32.mrb[0].mxu0
    %v1260 = vadd.f32 0.0, %v1259
    %v1261 = vpop.f32.mrb[0].mxu0
    %1262 = vmatprep.mubr.f32.mxu0 0.0
    %1263 = vmatmul.mubr.f32.gmra.mrb[0].mxu0 %v1191
    %v1264 = vpop.f32.mrb[0].mxu0
    %v1265 = vadd.f32 0.0, %v1264
    %v1266 = vpop.f32.mrb[0].mxu0
    %1267 = vdwg.mxu0
    %v1268 = vmul.f32 %v758, %v1179
    %v1269 = vmul.f32 %v763, %v1184
    %vm1270 = vcmask 130048
    %v1272 = vsel %vm1270, %v1093, 0
    %1274 = vmatprep.subr.mxu0 0.0
    %1275 = vmatpush1.msra.mxu0 %v1268
    %1276 = vmatprep.subr.mxu0 0.0
    %1277 = vmatpush1.msra.mxu0 %v1269
    %1278 = vmatprep.subr.mxu0 0.0
    %1279 = vmatpush1.msra.mxu0 0.0
    %1280 = vmatprep.subr.mxu0 0.0
    %1281 = vmatpush1.msra.mxu0 0.0
    %1282 = vmatprep.subr.mxu0 0.0
    %1283 = vmatpush1.msra.mxu0 0.0
    %1284 = vmatprep.subr.mxu0 0.0
    %1285 = vmatpush1.msra.mxu0 0.0
    %1286 = vmatprep.subr.mxu0 0.0
    %1287 = vmatpush1.msra.mxu0 0.0
    %1288 = vmatprep.subr.mxu0 0.0
    %1289 = vmatpush1.msra.mxu0 0.0
    %1290 = vmatprep.subr.mxu0 0.0
    %1291 = vmatpush1.msra.mxu0 0.0
    %1292 = vmatprep.subr.mxu0 0.0
    %1293 = vmatpush1.msra.mxu0 0.0
    %1294 = vmatprep.subr.mxu0 0.0
    %1295 = vmatpush1.msra.mxu0 0.0
    %1296 = vmatprep.subr.mxu0 0.0
    %1297 = vmatpush1.msra.mxu0 0.0
    %1298 = vmatprep.subr.mxu0 0.0
    %1299 = vmatpush1.msra.mxu0 0.0
    %1300 = vmatprep.subr.mxu0 0.0
    %1301 = vmatpush1.msra.mxu0 0.0
    %1302 = vmatprep.subr.mxu0 0.0
    %1303 = vmatpush1.msra.mxu0 0.0
    %1304 = vmatprep.subr.mxu0 0.0
    %1305 = vmatpush1.msra.mxu0 0.0
    %1306 = vmatprep.subr.mxu0 0.0
    %1307 = vmatpush1.msra.mxu0 0.0
    %1308 = vmatprep.subr.mxu0 0.0
    %1309 = vmatpush1.msra.mxu0 0.0
    %1310 = vmatprep.subr.mxu0 0.0
    %1311 = vmatpush1.msra.mxu0 0.0
    %1312 = vmatprep.subr.mxu0 0.0
    %1313 = vmatpush1.msra.mxu0 0.0
    %1314 = vmatprep.subr.mxu0 0.0
    %1315 = vmatpush1.msra.mxu0 0.0
    %1316 = vmatprep.subr.mxu0 0.0
    %1317 = vmatpush1.msra.mxu0 0.0
    %1318 = vmatprep.subr.mxu0 0.0
    %1319 = vmatpush1.msra.mxu0 0.0
    %1320 = vmatprep.subr.mxu0 0.0
    %1321 = vmatpush1.msra.mxu0 0.0
    %1322 = vmatprep.subr.mxu0 0.0
    %1323 = vmatpush1.msra.mxu0 0.0
    %1324 = vmatprep.subr.mxu0 0.0
    %1325 = vmatpush1.msra.mxu0 0.0
    %1326 = vmatprep.subr.mxu0 0.0
    %1327 = vmatpush1.msra.mxu0 0.0
    %1328 = vmatprep.subr.mxu0 0.0
    %1329 = vmatpush1.msra.mxu0 0.0
    %1330 = vmatprep.subr.mxu0 0.0
    %1331 = vmatpush1.msra.mxu0 0.0
    %1332 = vmatprep.subr.mxu0 0.0
    %1333 = vmatpush1.msra.mxu0 0.0
    %1334 = vmatprep.subr.mxu0 0.0
    %1335 = vmatpush1.msra.mxu0 0.0
    %1336 = vmatprep.subr.mxu0 0.0
    %1337 = vmatpush1.msra.mxu0 0.0
    %1338 = vmatprep.mubr.f32.mxu0 0.0
    %1339 = vmatmul.mubr.f32.gmra.mrb[0].mxu0 %v1272
    %v1340 = vpop.f32.mrb[0].mxu0
    %v1341 = vadd.f32 0.0, %v1340
    %v1342 = vpop.f32.mrb[0].mxu0
    %1343 = vdwg.mxu0
    %v1345 = vsel %vm1270, %v1096, 0
    %1347 = vmatprep.subr.mxu0 0.0
    %1348 = vmatpush1.msra.mxu0 %v1268
    %1349 = vmatprep.subr.mxu0 0.0
    %1350 = vmatpush1.msra.mxu0 %v1269
    %1351 = vmatprep.subr.mxu0 0.0
    %1352 = vmatpush1.msra.mxu0 0.0
    %1353 = vmatprep.subr.mxu0 0.0
    %1354 = vmatpush1.msra.mxu0 0.0
    %1355 = vmatprep.subr.mxu0 0.0
    %1356 = vmatpush1.msra.mxu0 0.0
    %1357 = vmatprep.subr.mxu0 0.0
    %1358 = vmatpush1.msra.mxu0 0.0
    %1359 = vmatprep.subr.mxu0 0.0
    %1360 = vmatpush1.msra.mxu0 0.0
    %1361 = vmatprep.subr.mxu0 0.0
    %1362 = vmatpush1.msra.mxu0 0.0
    %1363 = vmatprep.subr.mxu0 0.0
    %1364 = vmatpush1.msra.mxu0 0.0
    %1365 = vmatprep.subr.mxu0 0.0
    %1366 = vmatpush1.msra.mxu0 0.0
    %1367 = vmatprep.subr.mxu0 0.0
    %1368 = vmatpush1.msra.mxu0 0.0
    %1369 = vmatprep.subr.mxu0 0.0
    %1370 = vmatpush1.msra.mxu0 0.0
    %1371 = vmatprep.subr.mxu0 0.0
    %1372 = vmatpush1.msra.mxu0 0.0
    %1373 = vmatprep.subr.mxu0 0.0
    %1374 = vmatpush1.msra.mxu0 0.0
    %1375 = vmatprep.subr.mxu0 0.0
    %1376 = vmatpush1.msra.mxu0 0.0
    %1377 = vmatprep.subr.mxu0 0.0
    %1378 = vmatpush1.msra.mxu0 0.0
    %1379 = vmatprep.subr.mxu0 0.0
    %1380 = vmatpush1.msra.mxu0 0.0
    %1381 = vmatprep.subr.mxu0 0.0
    %1382 = vmatpush1.msra.mxu0 0.0
    %1383 = vmatprep.subr.mxu0 0.0
    %1384 = vmatpush1.msra.mxu0 0.0
    %1385 = vmatprep.subr.mxu0 0.0
    %1386 = vmatpush1.msra.mxu0 0.0
    %1387 = vmatprep.subr.mxu0 0.0
    %1388 = vmatpush1.msra.mxu0 0.0
    %1389 = vmatprep.subr.mxu0 0.0
    %1390 = vmatpush1.msra.mxu0 0.0
    %1391 = vmatprep.subr.mxu0 0.0
    %1392 = vmatpush1.msra.mxu0 0.0
    %1393 = vmatprep.subr.mxu0 0.0
    %1394 = vmatpush1.msra.mxu0 0.0
    %1395 = vmatprep.subr.mxu0 0.0
    %1396 = vmatpush1.msra.mxu0 0.0
    %1397 = vmatprep.subr.mxu0 0.0
    %1398 = vmatpush1.msra.mxu0 0.0
    %1399 = vmatprep.subr.mxu0 0.0
    %1400 = vmatpush1.msra.mxu0 0.0
    %1401 = vmatprep.subr.mxu0 0.0
    %1402 = vmatpush1.msra.mxu0 0.0
    %1403 = vmatprep.subr.mxu0 0.0
    %1404 = vmatpush1.msra.mxu0 0.0
    %1405 = vmatprep.subr.mxu0 0.0
    %1406 = vmatpush1.msra.mxu0 0.0
    %1407 = vmatprep.subr.mxu0 0.0
    %1408 = vmatpush1.msra.mxu0 0.0
    %1409 = vmatprep.subr.mxu0 0.0
    %1410 = vmatpush1.msra.mxu0 0.0
    %1411 = vmatprep.mubr.f32.mxu0 0.0
    %1412 = vmatmul.mubr.f32.gmra.mrb[0].mxu0 %v1345
    %v1413 = vpop.f32.mrb[0].mxu0
    %v1414 = vadd.f32 0.0, %v1413
    %v1415 = vpop.f32.mrb[0].mxu0
    %1416 = vdwg.mxu0
    %v1418 = vsel %vm192, %v1341, 0
    %1420 = vmatprep.subr.mxu0 0.0
    %1421 = vmatpush1.msra.mxu0 %v1418
    %1422 = vmatprep.subr.mxu0 0.0
    %1423 = vmatpush1.msra.mxu0 0.0
    %1424 = vmatprep.subr.mxu0 0.0
    %1425 = vmatpush1.msra.mxu0 0.0
    %1426 = vmatprep.subr.mxu0 0.0
    %1427 = vmatpush1.msra.mxu0 0.0
    %1428 = vmatprep.subr.mxu0 0.0
    %1429 = vmatpush1.msra.mxu0 0.0
    %1430 = vmatprep.subr.mxu0 0.0
    %1431 = vmatpush1.msra.mxu0 0.0
    %1432 = vmatprep.subr.mxu0 0.0
    %1433 = vmatpush1.msra.mxu0 0.0
    %1434 = vmatprep.subr.mxu0 0.0
    %1435 = vmatpush1.msra.mxu0 0.0
    %1436 = vmatprep.subr.mxu0 0.0
    %1437 = vmatpush1.msra.mxu0 0.0
    %1438 = vmatprep.subr.mxu0 0.0
    %1439 = vmatpush1.msra.mxu0 0.0
    %1440 = vmatprep.subr.mxu0 0.0
    %1441 = vmatpush1.msra.mxu0 0.0
    %1442 = vmatprep.subr.mxu0 0.0
    %1443 = vmatpush1.msra.mxu0 0.0
    %1444 = vmatprep.subr.mxu0 0.0
    %1445 = vmatpush1.msra.mxu0 0.0
    %1446 = vmatprep.subr.mxu0 0.0
    %1447 = vmatpush1.msra.mxu0 0.0
    %1448 = vmatprep.subr.mxu0 0.0
    %1449 = vmatpush1.msra.mxu0 0.0
    %1450 = vmatprep.subr.mxu0 0.0
    %1451 = vmatpush1.msra.mxu0 0.0
    %1452 = vmatprep.subr.mxu0 0.0
    %1453 = vmatpush1.msra.mxu0 0.0
    %1454 = vmatprep.subr.mxu0 0.0
    %1455 = vmatpush1.msra.mxu0 0.0
    %1456 = vmatprep.subr.mxu0 0.0
    %1457 = vmatpush1.msra.mxu0 0.0
    %1458 = vmatprep.subr.mxu0 0.0
    %1459 = vmatpush1.msra.mxu0 0.0
    %1460 = vmatprep.subr.mxu0 0.0
    %1461 = vmatpush1.msra.mxu0 0.0
    %1462 = vmatprep.subr.mxu0 0.0
    %1463 = vmatpush1.msra.mxu0 0.0
    %1464 = vmatprep.subr.mxu0 0.0
    %1465 = vmatpush1.msra.mxu0 0.0
    %1466 = vmatprep.subr.mxu0 0.0
    %1467 = vmatpush1.msra.mxu0 0.0
    %1468 = vmatprep.subr.mxu0 0.0
    %1469 = vmatpush1.msra.mxu0 0.0
    %1470 = vmatprep.subr.mxu0 0.0
    %1471 = vmatpush1.msra.mxu0 0.0
    %1472 = vmatprep.subr.mxu0 0.0
    %1473 = vmatpush1.msra.mxu0 0.0
    %1474 = vmatprep.subr.mxu0 0.0
    %1475 = vmatpush1.msra.mxu0 0.0
    %1476 = vmatprep.subr.mxu0 0.0
    %1477 = vmatpush1.msra.mxu0 0.0
    %1478 = vmatprep.subr.mxu0 0.0
    %1479 = vmatpush1.msra.mxu0 0.0
    %1480 = vmatprep.subr.mxu0 0.0
    %1481 = vmatpush1.msra.mxu0 0.0
    %1482 = vmatprep.subr.mxu0 0.0
    %1483 = vmatpush1.msra.mxu0 0.0
    %1484 = vmatprep.mubr.f32.mxu0 0.0
    %1485 = vmatmul.mubr.f32.gmra.mrb[0].mxu0 %v1188
    %v1486 = vpop.f32.mrb[0].mxu0
    %v1487 = vadd.f32 0.0, %v1486
    %v1488 = vpop.f32.mrb[0].mxu0
    %1489 = vmatprep.mubr.f32.mxu0 0.0
    %1490 = vmatmul.mubr.f32.gmra.mrb[0].mxu0 %v1191
    %v1491 = vpop.f32.mrb[0].mxu0
    %v1492 = vadd.f32 0.0, %v1491
    %v1493 = vpop.f32.mrb[0].mxu0
    %1494 = vdwg.mxu0
    %v1495 = vmul.f32 %v758, %v1487
    %v1496 = vmul.f32 %v763, %v1492
    %v1497 = vmul.f32 %v758, %v1260
    %v1498 = vmul.f32 %v763, %v1265
    %v1500 = vsel %vm1270, %v1102, 0
    %1502 = vmatprep.subr.mxu0 0.0
    %1503 = vmatpush1.msra.mxu0 %v1497
    %1504 = vmatprep.subr.mxu0 0.0
    %1505 = vmatpush1.msra.mxu0 %v1498
    %1506 = vmatprep.subr.mxu0 0.0
    %1507 = vmatpush1.msra.mxu0 0.0
    %1508 = vmatprep.subr.mxu0 0.0
    %1509 = vmatpush1.msra.mxu0 0.0
    %1510 = vmatprep.subr.mxu0 0.0
    %1511 = vmatpush1.msra.mxu0 0.0
    %1512 = vmatprep.subr.mxu0 0.0
    %1513 = vmatpush1.msra.mxu0 0.0
    %1514 = vmatprep.subr.mxu0 0.0
    %1515 = vmatpush1.msra.mxu0 0.0
    %1516 = vmatprep.subr.mxu0 0.0
    %1517 = vmatpush1.msra.mxu0 0.0
    %1518 = vmatprep.subr.mxu0 0.0
    %1519 = vmatpush1.msra.mxu0 0.0
    %1520 = vmatprep.subr.mxu0 0.0
    %1521 = vmatpush1.msra.mxu0 0.0
    %1522 = vmatprep.subr.mxu0 0.0
    %1523 = vmatpush1.msra.mxu0 0.0
    %1524 = vmatprep.subr.mxu0 0.0
    %1525 = vmatpush1.msra.mxu0 0.0
    %1526 = vmatprep.subr.mxu0 0.0
    %1527 = vmatpush1.msra.mxu0 0.0
    %1528 = vmatprep.subr.mxu0 0.0
    %1529 = vmatpush1.msra.mxu0 0.0
    %1530 = vmatprep.subr.mxu0 0.0
    %1531 = vmatpush1.msra.mxu0 0.0
    %1532 = vmatprep.subr.mxu0 0.0
    %1533 = vmatpush1.msra.mxu0 0.0
    %1534 = vmatprep.subr.mxu0 0.0
    %1535 = vmatpush1.msra.mxu0 0.0
    %1536 = vmatprep.subr.mxu0 0.0
    %1537 = vmatpush1.msra.mxu0 0.0
    %1538 = vmatprep.subr.mxu0 0.0
    %1539 = vmatpush1.msra.mxu0 0.0
    %1540 = vmatprep.subr.mxu0 0.0
    %1541 = vmatpush1.msra.mxu0 0.0
    %1542 = vmatprep.subr.mxu0 0.0
    %1543 = vmatpush1.msra.mxu0 0.0
    %1544 = vmatprep.subr.mxu0 0.0
    %1545 = vmatpush1.msra.mxu0 0.0
    %1546 = vmatprep.subr.mxu0 0.0
    %1547 = vmatpush1.msra.mxu0 0.0
    %1548 = vmatprep.subr.mxu0 0.0
    %1549 = vmatpush1.msra.mxu0 0.0
    %1550 = vmatprep.subr.mxu0 0.0
    %1551 = vmatpush1.msra.mxu0 0.0
    %1552 = vmatprep.subr.mxu0 0.0
    %1553 = vmatpush1.msra.mxu0 0.0
    %1554 = vmatprep.subr.mxu0 0.0
    %1555 = vmatpush1.msra.mxu0 0.0
    %1556 = vmatprep.subr.mxu0 0.0
    %1557 = vmatpush1.msra.mxu0 0.0
    %1558 = vmatprep.subr.mxu0 0.0
    %1559 = vmatpush1.msra.mxu0 0.0
    %1560 = vmatprep.subr.mxu0 0.0
    %1561 = vmatpush1.msra.mxu0 0.0
    %1562 = vmatprep.subr.mxu0 0.0
    %1563 = vmatpush1.msra.mxu0 0.0
    %1564 = vmatprep.subr.mxu0 0.0
    %1565 = vmatpush1.msra.mxu0 0.0
    %1566 = vmatprep.mubr.f32.mxu0 0.0
    %1567 = vmatmul.mubr.f32.gmra.mrb[0].mxu0 %v1500
    %v1568 = vpop.f32.mrb[0].mxu0
    %v1569 = vadd.f32 0.0, %v1568
    %v1570 = vpop.f32.mrb[0].mxu0
    %1571 = vdwg.mxu0
    %v1573 = vsel %vm1270, %v1099, 0
    %1575 = vmatprep.subr.mxu0 0.0
    %1576 = vmatpush1.msra.mxu0 %v1495
    %1577 = vmatprep.subr.mxu0 0.0
    %1578 = vmatpush1.msra.mxu0 %v1496
    %1579 = vmatprep.subr.mxu0 0.0
    %1580 = vmatpush1.msra.mxu0 0.0
    %1581 = vmatprep.subr.mxu0 0.0
    %1582 = vmatpush1.msra.mxu0 0.0
    %1583 = vmatprep.subr.mxu0 0.0
    %1584 = vmatpush1.msra.mxu0 0.0
    %1585 = vmatprep.subr.mxu0 0.0
    %1586 = vmatpush1.msra.mxu0 0.0
    %1587 = vmatprep.subr.mxu0 0.0
    %1588 = vmatpush1.msra.mxu0 0.0
    %1589 = vmatprep.subr.mxu0 0.0
    %1590 = vmatpush1.msra.mxu0 0.0
    %1591 = vmatprep.subr.mxu0 0.0
    %1592 = vmatpush1.msra.mxu0 0.0
    %1593 = vmatprep.subr.mxu0 0.0
    %1594 = vmatpush1.msra.mxu0 0.0
    %1595 = vmatprep.subr.mxu0 0.0
    %1596 = vmatpush1.msra.mxu0 0.0
    %1597 = vmatprep.subr.mxu0 0.0
    %1598 = vmatpush1.msra.mxu0 0.0
    %1599 = vmatprep.subr.mxu0 0.0
    %1600 = vmatpush1.msra.mxu0 0.0
    %1601 = vmatprep.subr.mxu0 0.0
    %1602 = vmatpush1.msra.mxu0 0.0
    %1603 = vmatprep.subr.mxu0 0.0
    %1604 = vmatpush1.msra.mxu0 0.0
    %1605 = vmatprep.subr.mxu0 0.0
    %1606 = vmatpush1.msra.mxu0 0.0
    %1607 = vmatprep.subr.mxu0 0.0
    %1608 = vmatpush1.msra.mxu0 0.0
    %1609 = vmatprep.subr.mxu0 0.0
    %1610 = vmatpush1.msra.mxu0 0.0
    %1611 = vmatprep.subr.mxu0 0.0
    %1612 = vmatpush1.msra.mxu0 0.0
    %1613 = vmatprep.subr.mxu0 0.0
    %1614 = vmatpush1.msra.mxu0 0.0
    %1615 = vmatprep.subr.mxu0 0.0
    %1616 = vmatpush1.msra.mxu0 0.0
    %1617 = vmatprep.subr.mxu0 0.0
    %1618 = vmatpush1.msra.mxu0 0.0
    %1619 = vmatprep.subr.mxu0 0.0
    %1620 = vmatpush1.msra.mxu0 0.0
    %1621 = vmatprep.subr.mxu0 0.0
    %1622 = vmatpush1.msra.mxu0 0.0
    %1623 = vmatprep.subr.mxu0 0.0
    %1624 = vmatpush1.msra.mxu0 0.0
    %1625 = vmatprep.subr.mxu0 0.0
    %1626 = vmatpush1.msra.mxu0 0.0
    %1627 = vmatprep.subr.mxu0 0.0
    %1628 = vmatpush1.msra.mxu0 0.0
    %1629 = vmatprep.subr.mxu0 0.0
    %1630 = vmatpush1.msra.mxu0 0.0
    %1631 = vmatprep.subr.mxu0 0.0
    %1632 = vmatpush1.msra.mxu0 0.0
    %1633 = vmatprep.subr.mxu0 0.0
    %1634 = vmatpush1.msra.mxu0 0.0
    %1635 = vmatprep.subr.mxu0 0.0
    %1636 = vmatpush1.msra.mxu0 0.0
    %1637 = vmatprep.subr.mxu0 0.0
    %1638 = vmatpush1.msra.mxu0 0.0
    %1639 = vmatprep.mubr.f32.mxu0 0.0
    %1640 = vmatmul.mubr.f32.gmra.mrb[0].mxu0 %v1573
    %v1641 = vpop.f32.mrb[0].mxu0
    %v1642 = vadd.f32 %v1569, %v1641
    %v1643 = vpop.f32.mrb[0].mxu0
    %1644 = vdwg.mxu0
    %v1645 = vsub.f32 %v1642, %v1414
    %v1646 = vsub.f32 0.0, %v1645
    %v1647 = vmul.f32 %v1082, 0.01
    %v1648 = vsub.f32 %v1646, %v1647
    %1649 = vst [vmem:[#allocation2] sm:$0xf] %v1648
    // Predicated region
    $region34: #{tpu_custom_call.1} parent=1 // pred_check
      _
    $region35: #{tpu_custom_call.1} parent=1 // pred_check_branch
      %1651 = sbr.rel (0) target = $region37
    $region36: #{tpu_custom_call.1} parent=1 // pred_region
      %s1653 = ssub.s32 64, 64
      %1654 = vsyncadd [#allocation3], %s1653
      %s1656 = sshll.u32 [#allocation2], 4
      %s1657 = int_to_ptr.vmem [resolvable:$true] %s1656
      %1659 = dma.vmem_to_hbm [thread:$0]  %s1657, 64, %s8, [#allocation3]
    $region37: #{tpu_custom_call.1} parent=1 // pred_fallthru
      _
    // Predicated region
    $region38: #{tpu_custom_call.1} parent=1 // pred_check
      _
    $region39: #{tpu_custom_call.1} parent=1 // pred_check_branch
      %1661 = sbr.rel (0) target = $region41
    $region40: #{tpu_custom_call.1} parent=1 // pred_region
      %1662 = dma.done [#allocation3], 64
    $region41: #{tpu_custom_call.1} parent=1 // pred_fallthru
      _
    %1663 = vsyncpa [#allocation3], 1

</llo_original>
